<compile_context>
chip_gen: v5e
topology: v5e:2x2
jax: 0.10.0
libtpu: 0.0.40
codegen_flags: <defaults>
</compile_context>

<pallas_src>
import functools
import math

import jax
import jax.numpy as jnp
from jax.experimental import pallas as pl
from jax.experimental.pallas import tpu as pltpu


def _round_up(x, m):
    return (x + m - 1) // m * m


def _pick_sq(seq_len, cap):
    """Largest query-tile length dividing S, <= cap, multiple of 8 (block-shape legal)."""
    if seq_len <= cap:
        return seq_len
    for d in range(cap, 7, -1):
        if seq_len % d == 0 and d % 8 == 0:
            return d
    # TODO(synk): pad S and mask padded keys to -inf for awkward lengths; full-S fallback.
    return seq_len


def _derive_vmem_limit(*, S, Sq, Ex, Dp, H, small_vmem):
    weights = 4 * H * Ex * Dp * 2                         # wq + wkv + wo (bf16, 1 buffer)
    biases = (3 * H * Dp + 3 * Ex) * 4
    xf_blk = S * Ex * 2                                   # bf16 K/V source block
    xq_blk = 2 * Sq * Ex * 4                              # f32 query tile (double buffered)
    out_blk = 2 * Sq * Ex * 4
    scratch = 2 * H * S * Dp * 2 + Sq * Ex * 4 + Sq * Ex * 2   # K/V cache + acc + bf16 q
    work = 3 * Sq * S * 4                                 # per-head score working set
    need = int(1.4 * (weights + biases + xf_blk + xq_blk + out_blk + scratch + work)) + (4 << 20)
    cap = (56 << 20) if small_vmem else (100 << 20)
    return max(32 << 20, min(need, cap))


def _mha_addnorm_kernel(xq_ref, xf_ref, wq_ref, bq_ref, wkv_ref, bkv_ref,
                        wo_ref, bo_ref, gamma_ref, beta_ref, o_ref,
                        k_ref, v_ref, acc_ref, xqb_ref,
                        *, num_heads, head_dim_pad, embed_dim, eps):
    # xq_ref : (1, Sq, Ex) f32   — query rows of x (also the residual)
    # xf_ref : (1, S,  Ex) bf16  — full sequence (K/V source)
    # wq     : (H, Ex, Dp) bf16  — per-head Q weight, softmax scale folded in
    # bq     : (H, 1, Dp)  f32   — per-head Q bias, scale folded in
    # wkv    : (H, Ex, 2*Dp) bf16, bkv: (H, 1, 2*Dp) f32 — fused per-head [Wk | Wv]
    # wo     : (H, Dp, Ex) bf16  — per-head slice of the output projection
    # bo/gamma/beta : (1, Ex) f32
    # scratch: k/v caches (H, S, Dp) bf16, acc (Sq, Ex) f32, xqb (Sq, Ex) bf16
    H = num_heads
    Dp = head_dim_pad
    qi = pl.program_id(1)
    h = pl.program_id(2)

    # Once per (b, q): cache the bf16 copy of the query tile, zero the head accumulator.
    @pl.when(h == 0)
    def _():
        xqb_ref[...] = xq_ref[0].astype(jnp.bfloat16)
        acc_ref[...] = jnp.zeros_like(acc_ref)

    # Once per batch (first query tile): project and cache K/V for this head.
    @pl.when(qi == 0)
    def _():
        kv = jnp.dot(xf_ref[0], wkv_ref[h],
                     preferred_element_type=jnp.float32) + bkv_ref[h]        # (S, 2*Dp)
        k_ref[h] = kv[:, :Dp].astype(jnp.bfloat16)
        v_ref[h] = kv[:, Dp:].astype(jnp.bfloat16)

    # Q projection for this head (scale already folded into wq / bq).
    q_h = (jnp.dot(xqb_ref[...], wq_ref[h],
                   preferred_element_type=jnp.float32)
           + bq_ref[h]).astype(jnp.bfloat16)                                  # (Sq, Dp)

    k_h = k_ref[h]                                                            # (S, Dp) bf16
    v_h = v_ref[h]                                                            # (S, Dp) bf16

    # Scores: q_h @ k_h^T (contract the head dim of both operands).
    s = jax.lax.dot_general(q_h, k_h, (((1,), (1,)), ((), ())),
                            preferred_element_type=jnp.float32)               # (Sq, S)
    s = s - jnp.max(s, axis=-1, keepdims=True)
    p = jnp.exp(s)
    denom = jnp.sum(p, axis=-1, keepdims=True)                                # (Sq, 1)

    # Deferred normalization: PV matmul on unnormalized p, then rescale the small ctx.
    ctx = jnp.dot(p.astype(jnp.bfloat16), v_h,
                  preferred_element_type=jnp.float32)                         # (Sq, Dp)
    ctx = ctx * (1.0 / denom)                                                 # exact recip

    # Accumulate this head's contribution to the output projection.
    acc_ref[...] += jnp.dot(ctx.astype(jnp.bfloat16), wo_ref[h],
                            preferred_element_type=jnp.float32)               # (Sq, Ex)

    # Last head: bias + residual + LayerNorm over the TRUE embedding width.
    @pl.when(h == H - 1)
    def _():
        attn = acc_ref[...] + bo_ref[...]
        y = xq_ref[0] + attn                      # dropout == identity (eval mode)
        Ex = y.shape[-1]
        inv_e = 1.0 / embed_dim
        mean = jnp.sum(y, axis=-1, keepdims=True) * inv_e
        yc = y - mean
        # Padded columns of y are exactly zero (zero-padded x / weights / biases), so
        # correct their (0 - mean)^2 contribution.  NOTE: fragile if padding changes.
        var = (jnp.sum(yc * yc, axis=-1, keepdims=True)
               - (Ex - embed_dim) * mean * mean) * inv_e
        y_hat = yc * jax.lax.rsqrt(var + eps)
        # gamma/beta are zero-padded, so padded output columns store exact zeros.
        o_ref[0] = (y_hat * gamma_ref[...] + beta_ref[...]).astype(o_ref.dtype)


def mha_add_norm(x, params, *, num_heads, eps=1e-5):
    """x: (B, S, E) float32. params: dict of PyTorch-convention weights."""
    B, S, E = x.shape
    H = num_heads
    D = E // H
    assert H * D == E

    Ex = _round_up(E, 128)        # lane-dense embedding width (residual / LN / output)
    Dp = _round_up(D, 128)        # lane-dense per-head width

    kind = jax.devices()[0].device_kind.lower()
    small_vmem = ("v7" in kind) or ("7x" in kind)        # v7x: 64 MiB VMEM per TC
    sq_cap = 256 if small_vmem else 512
    Sq = _pick_sq(S, sq_cap)
    n_q = S // Sq

    scale = 1.0 / math.sqrt(D)

    in_w = params['in_proj_weight'].astype(jnp.float32)  # (3E, E), PyTorch (out, in)
    in_b = params['in_proj_bias'].astype(jnp.float32)    # (3E,)
    wq_pt, wk_pt, wv_pt = in_w[:E], in_w[E:2 * E], in_w[2 * E:]
    bq_pt, bk_pt, bv_pt = in_b[:E], in_b[E:2 * E], in_b[2 * E:]

    def head_w(w_pt):   # (E, E) PyTorch (out, in) -> (H, Ex, Dp) for  x @ w  per head
        w = w_pt.reshape(H, D, E).transpose(0, 2, 1)     # (H, E_in, D)
        return jnp.pad(w, ((0, 0), (0, Ex - E), (0, Dp - D)))

    def head_b(b_pt):   # (E,) -> (H, 1, Dp)
        return jnp.pad(b_pt.reshape(H, 1, D), ((0, 0), (0, 0), (0, Dp - D)))

    wq = (head_w(wq_pt) * scale).astype(jnp.bfloat16)                     # scale folded in
    bq = head_b(bq_pt) * scale
    wkv = jnp.concatenate([head_w(wk_pt), head_w(wv_pt)], axis=-1).astype(jnp.bfloat16)
    bkv = jnp.concatenate([head_b(bk_pt), head_b(bv_pt)], axis=-1)

    wo_pt = params['out_proj_weight'].astype(jnp.float32)                 # (E, E) (out, in)
    wo = wo_pt.T.reshape(H, D, E)                                          # (H, D_in, E_out)
    wo = jnp.pad(wo, ((0, 0), (0, Dp - D), (0, Ex - E))).astype(jnp.bfloat16)
    bo = jnp.pad(params['out_proj_bias'].astype(jnp.float32), (0, Ex - E)).reshape(1, Ex)
    gamma = jnp.pad(params['ln_weight'].astype(jnp.float32), (0, Ex - E)).reshape(1, Ex)
    beta = jnp.pad(params['ln_bias'].astype(jnp.float32), (0, Ex - E)).reshape(1, Ex)

    x_f32 = jnp.pad(x.astype(jnp.float32), ((0, 0), (0, 0), (0, Ex - E)))  # residual/Q src
    x_bf16 = x_f32.astype(jnp.bfloat16)                                    # K/V source

    kernel = functools.partial(_mha_addnorm_kernel, num_heads=H, head_dim_pad=Dp,
                               embed_dim=E, eps=eps)
    vmem_limit = _derive_vmem_limit(S=S, Sq=Sq, Ex=Ex, Dp=Dp, H=H, small_vmem=small_vmem)

    def build(single_buffer):
        def const_spec(shape):
            idx = lambda b, q, h: (0,) * len(shape)
            if single_buffer:
                return pl.BlockSpec(shape, idx, pipeline_mode=pl.Buffered(1))
            return pl.BlockSpec(shape, idx)

        xf_idx = lambda b, q, h: (b, 0, 0)
        if single_buffer:
            xf_spec = pl.BlockSpec((1, S, Ex), xf_idx, pipeline_mode=pl.Buffered(1))
        else:
            xf_spec = pl.BlockSpec((1, S, Ex), xf_idx)

        return pl.pallas_call(
            kernel,
            out_shape=jax.ShapeDtypeStruct((B, S, Ex), x.dtype),
            grid_spec=pltpu.PrefetchScalarGridSpec(
                num_scalar_prefetch=0,
                grid=(B, n_q, H),
                in_specs=[
                    pl.BlockSpec((1, Sq, Ex), lambda b, q, h: (b, q, 0)),  # query tile (f32)
                    xf_spec,                                               # full seq (bf16)
                    const_spec((H, Ex, Dp)),        # wq
                    const_spec((H, 1, Dp)),         # bq
                    const_spec((H, Ex, 2 * Dp)),    # wkv
                    const_spec((H, 1, 2 * Dp)),     # bkv
                    const_spec((H, Dp, Ex)),        # wo
                    const_spec((1, Ex)),            # bo
                    const_spec((1, Ex)),            # gamma
                    const_spec((1, Ex)),            # beta
                ],
                out_specs=pl.BlockSpec((1, Sq, Ex), lambda b, q, h: (b, q, 0)),
                scratch_shapes=[
                    pltpu.VMEM((H, S, Dp), jnp.bfloat16),   # K cache (per batch)
                    pltpu.VMEM((H, S, Dp), jnp.bfloat16),   # V cache (per batch)
                    pltpu.VMEM((Sq, Ex), jnp.float32),      # output-projection accumulator
                    pltpu.VMEM((Sq, Ex), jnp.bfloat16),     # bf16 query tile cache
                ],
            ),
            compiler_params=pltpu.CompilerParams(
                dimension_semantics=("parallel", "arbitrary", "arbitrary"),
                vmem_limit_bytes=vmem_limit,
            ),
        )(x_f32, x_bf16, wq, bq, wkv, bkv, wo, bo, gamma, beta)

    try:
        out_p = build(single_buffer=True)
    except Exception:
        # pipeline_mode=pl.Buffered(1) unsupported on this build -> default double buffering
        # (costs VMEM only, not correctness).
        out_p = build(single_buffer=False)

    return out_p[..., :E]


def init_params(key, embedding_dim):
    E = embedding_dim
    ks = jax.random.split(key, 4)
    # Deterministic small-scale init (synthetic; not a checkpoint load).
    return {
        'in_proj_weight': jax.random.normal(ks[0], (3 * E, E), jnp.float32) * 0.05,
        'in_proj_bias':   jax.random.normal(ks[1], (3 * E,), jnp.float32) * 0.02,
        'out_proj_weight': jax.random.normal(ks[2], (E, E), jnp.float32) * 0.05,
        'out_proj_bias':   jax.random.normal(ks[3], (E,), jnp.float32) * 0.02,
        'ln_weight': jnp.ones((E,), jnp.float32),
        'ln_bias':   jnp.zeros((E,), jnp.float32),
    }


def _reference(x, params, num_heads, eps=1e-5):
    """Pure-JAX f32 reference mirroring nn.MultiheadAttention(batch_first) + add&norm (eval)."""
    with jax.default_matmul_precision("highest"):
        B, S, E = x.shape
        H, D = num_heads, E // num_heads
        in_w, in_b = params['in_proj_weight'], params['in_proj_bias']
        wq, wk, wv = in_w[:E], in_w[E:2 * E], in_w[2 * E:]
        bq, bk, bv = in_b[:E], in_b[E:2 * E], in_b[2 * E:]
        q = (x @ wq.T + bq).reshape(B, S, H, D).transpose(0, 2, 1, 3)
        k = (x @ wk.T + bk).reshape(B, S, H, D).transpose(0, 2, 1, 3)
        v = (x @ wv.T + bv).reshape(B, S, H, D).transpose(0, 2, 1, 3)
        s = jnp.einsum('bhsd,bhtd->bhst', q, k) / math.sqrt(D)
        p = jax.nn.softmax(s, axis=-1)
        ctx = jnp.einsum('bhst,bhtd->bhsd', p, v).transpose(0, 2, 1, 3).reshape(B, S, E)
        attn = ctx @ params['out_proj_weight'].T + params['out_proj_bias']
        y = x + attn
        mean = y.mean(-1, keepdims=True)
        var = ((y - mean) ** 2).mean(-1, keepdims=True)
        return (y - mean) / jnp.sqrt(var + eps) * params['ln_weight'] + params['ln_bias']


def _check(B, S, E, H, seed):
    key = jax.random.PRNGKey(seed)
    kx, kp = jax.random.split(key)
    x = jax.random.normal(kx, (B, S, E), jnp.float32)
    params = init_params(kp, E)

    out = mha_add_norm(x, params, num_heads=H)
    out = jax.block_until_ready(out)

    ref = _reference(x, params, H)
    assert out.shape == (B, S, E)
    max_err = float(jnp.max(jnp.abs(out - ref)))
    # bf16 MXU operands -> looser tolerance than pure f32.
    assert jnp.allclose(out, ref, atol=2e-2, rtol=2e-2), \
        f"mismatch vs pure-JAX reference at (B,S,E,H)=({B},{S},{E},{H}): max abs err {max_err}"


if __name__ == "__main__":
    # Small shapes consistent with the module (batch=2, seq=8, embed=32, heads=4).
    _check(B=2, S=8, E=32, H=4, seed=0)
    # Multi-query-tile + multi-batch check: exercises the per-batch K/V cache reuse path.
    _check(B=2, S=1024, E=32, H=4, seed=0)
    print("KERNEL_OK")
</pallas_src>

<mosaic_0001>
module attributes {stable_mosaic.version = 11 : i64} {
  func.func @_mha_addnorm_kernel(%arg0: i32, %arg1: i32, %arg2: i32, %arg3: memref<1x8x128xf32, #tpu.memory_space<vmem>>, %arg4: memref<1x8x128xbf16, #tpu.memory_space<vmem>>, %arg5: memref<4x128x128xbf16, #tpu.memory_space<vmem>>, %arg6: memref<4x1x128xf32, #tpu.memory_space<vmem>>, %arg7: memref<4x128x256xbf16, #tpu.memory_space<vmem>>, %arg8: memref<4x1x256xf32, #tpu.memory_space<vmem>>, %arg9: memref<4x128x128xbf16, #tpu.memory_space<vmem>>, %arg10: memref<1x128xf32, #tpu.memory_space<vmem>>, %arg11: memref<1x128xf32, #tpu.memory_space<vmem>>, %arg12: memref<1x128xf32, #tpu.memory_space<vmem>>, %arg13: memref<1x8x128xf32, #tpu.memory_space<vmem>>, %arg14: memref<4x8x128xbf16, #tpu.memory_space<vmem>>, %arg15: memref<4x8x128xbf16, #tpu.memory_space<vmem>>, %arg16: memref<8x128xf32, #tpu.memory_space<vmem>>, %arg17: memref<8x128xbf16, #tpu.memory_space<vmem>>) attributes {dimension_semantics = [#tpu.dimension_semantics<parallel>, #tpu.dimension_semantics<arbitrary>, #tpu.dimension_semantics<arbitrary>], iteration_bounds = array<i64: 2, 1, 4>, scalar_prefetch = 0 : i64, scratch_operands = 4 : i64, tpu.core_type = #tpu.core_type<tc>, window_params = [{transform_indices = @transform_0, window_bounds = array<i64: 1, 8, 128>}, {pipeline_mode = #tpu.pipeline_mode<synchronous>, transform_indices = @transform_1, window_bounds = array<i64: 1, 8, 128>}, {pipeline_mode = #tpu.pipeline_mode<synchronous>, transform_indices = @transform_2, window_bounds = array<i64: 4, 128, 128>}, {pipeline_mode = #tpu.pipeline_mode<synchronous>, transform_indices = @transform_3, window_bounds = array<i64: 4, 1, 128>}, {pipeline_mode = #tpu.pipeline_mode<synchronous>, transform_indices = @transform_4, window_bounds = array<i64: 4, 128, 256>}, {pipeline_mode = #tpu.pipeline_mode<synchronous>, transform_indices = @transform_5, window_bounds = array<i64: 4, 1, 256>}, {pipeline_mode = #tpu.pipeline_mode<synchronous>, transform_indices = @transform_6, window_bounds = array<i64: 4, 128, 128>}, {pipeline_mode = #tpu.pipeline_mode<synchronous>, transform_indices = @transform_7, window_bounds = array<i64: 1, 128>}, {pipeline_mode = #tpu.pipeline_mode<synchronous>, transform_indices = @transform_8, window_bounds = array<i64: 1, 128>}, {pipeline_mode = #tpu.pipeline_mode<synchronous>, transform_indices = @transform_9, window_bounds = array<i64: 1, 128>}, {transform_indices = @transform_10, window_bounds = array<i64: 1, 8, 128>}]} {
    %c0_i32 = arith.constant 0 : i32
    %0 = arith.cmpi eq, %arg2, %c0_i32 : i32
    %1 = arith.extui %0 : i1 to i32
    %c0_i32_0 = arith.constant 0 : i32
    %2 = arith.cmpi ne, %1, %c0_i32_0 : i32
    scf.if %2 {
      %c0_25 = arith.constant 0 : index
      %c0_26 = arith.constant 0 : index
      %c0_27 = arith.constant 0 : index
      %48 = vector.load %arg3[%c0_25, %c0_26, %c0_27] : memref<1x8x128xf32, #tpu.memory_space<vmem>>, vector<1x8x128xf32>
      %49 = vector.shape_cast %48 : vector<1x8x128xf32> to vector<8x128xf32>
      %50 = arith.truncf %49 : vector<8x128xf32> to vector<8x128xbf16>
      %c0_28 = arith.constant 0 : index
      %c0_29 = arith.constant 0 : index
      %51 = vector.load %arg17[%c0_28, %c0_29] : memref<8x128xbf16, #tpu.memory_space<vmem>>, vector<8x128xbf16>
      tpu.vector_store %arg17[%c0_28, %c0_29], %50 {strides = array<i32>} : memref<8x128xbf16, #tpu.memory_space<vmem>>, vector<8x128xbf16>,
      %cst_30 = arith.constant 0.000000e+00 : f32
      %52 = vector.broadcast %cst_30 : f32 to vector<8x128xf32>
      %c0_31 = arith.constant 0 : index
      %c0_32 = arith.constant 0 : index
      %53 = vector.load %arg16[%c0_31, %c0_32] : memref<8x128xf32, #tpu.memory_space<vmem>>, vector<8x128xf32>
      tpu.vector_store %arg16[%c0_31, %c0_32], %52 {strides = array<i32>} : memref<8x128xf32, #tpu.memory_space<vmem>>, vector<8x128xf32>,
    } else {
    }
    %c0_i32_1 = arith.constant 0 : i32
    %3 = arith.cmpi eq, %arg1, %c0_i32_1 : i32
    %4 = arith.extui %3 : i1 to i32
    %c0_i32_2 = arith.constant 0 : i32
    %5 = arith.cmpi ne, %4, %c0_i32_2 : i32
    scf.if %5 {
      %c0_25 = arith.constant 0 : index
      %c0_26 = arith.constant 0 : index
      %c0_27 = arith.constant 0 : index
      %48 = vector.load %arg4[%c0_25, %c0_26, %c0_27] : memref<1x8x128xbf16, #tpu.memory_space<vmem>>, vector<1x8x128xbf16>
      %49 = vector.shape_cast %48 : vector<1x8x128xbf16> to vector<8x128xbf16>
      %50 = arith.index_cast %arg2 : i32 to index
      %c0_28 = arith.constant 0 : index
      %c0_29 = arith.constant 0 : index
      %51 = vector.load %arg7[%50, %c0_28, %c0_29] : memref<4x128x256xbf16, #tpu.memory_space<vmem>>, vector<1x128x256xbf16>
      %52 = vector.shape_cast %51 : vector<1x128x256xbf16> to vector<128x256xbf16>
      %cst_30 = arith.constant dense<0.000000e+00> : vector<8x256xf32>
      %53 = tpu.matmul %49, %52, %cst_30 {dimension_numbers = #tpu.dot_dimension_numbers<[1], [0], [0], [1], [0, 0, 1, 1], [], []>} : vector<8x128xbf16>, vector<128x256xbf16>, vector<8x256xf32> -> vector<8x256xf32>
      %54 = arith.index_cast %arg2 : i32 to index
      %c0_31 = arith.constant 0 : index
      %c0_32 = arith.constant 0 : index
      %55 = vector.load %arg8[%54, %c0_31, %c0_32] : memref<4x1x256xf32, #tpu.memory_space<vmem>>, vector<1x1x256xf32>
      %56 = vector.shape_cast %55 : vector<1x1x256xf32> to vector<1x256xf32>
      %57 = vector.broadcast %56 : vector<1x256xf32> to vector<8x256xf32>
      %58 = arith.addf %53, %57 : vector<8x256xf32>
      %59 = vector.extract_strided_slice %58 {offsets = [0, 0], sizes = [8, 128], strides = [1, 1]} : vector<8x256xf32> to vector<8x128xf32>
      %60 = arith.truncf %59 : vector<8x128xf32> to vector<8x128xbf16>
      %61 = arith.index_cast %arg2 : i32 to index
      %c0_33 = arith.constant 0 : index
      %c0_34 = arith.constant 0 : index
      %62 = vector.load %arg14[%61, %c0_33, %c0_34] : memref<4x8x128xbf16, #tpu.memory_space<vmem>>, vector<1x8x128xbf16>
      %63 = vector.shape_cast %62 : vector<1x8x128xbf16> to vector<8x128xbf16>
      %64 = vector.shape_cast %60 : vector<8x128xbf16> to vector<1x8x128xbf16>
      tpu.vector_store %arg14[%61, %c0_33, %c0_34], %64 {strides = array<i32>} : memref<4x8x128xbf16, #tpu.memory_space<vmem>>, vector<1x8x128xbf16>,
      %65 = vector.extract_strided_slice %58 {offsets = [0, 128], sizes = [8, 128], strides = [1, 1]} : vector<8x256xf32> to vector<8x128xf32>
      %66 = arith.truncf %65 : vector<8x128xf32> to vector<8x128xbf16>
      %67 = arith.index_cast %arg2 : i32 to index
      %c0_35 = arith.constant 0 : index
      %c0_36 = arith.constant 0 : index
      %68 = vector.load %arg15[%67, %c0_35, %c0_36] : memref<4x8x128xbf16, #tpu.memory_space<vmem>>, vector<1x8x128xbf16>
      %69 = vector.shape_cast %68 : vector<1x8x128xbf16> to vector<8x128xbf16>
      %70 = vector.shape_cast %66 : vector<8x128xbf16> to vector<1x8x128xbf16>
      tpu.vector_store %arg15[%67, %c0_35, %c0_36], %70 {strides = array<i32>} : memref<4x8x128xbf16, #tpu.memory_space<vmem>>, vector<1x8x128xbf16>,
    } else {
    }
    %c0 = arith.constant 0 : index
    %c0_3 = arith.constant 0 : index
    %6 = vector.load %arg17[%c0, %c0_3] : memref<8x128xbf16, #tpu.memory_space<vmem>>, vector<8x128xbf16>
    %7 = arith.index_cast %arg2 : i32 to index
    %c0_4 = arith.constant 0 : index
    %c0_5 = arith.constant 0 : index
    %8 = vector.load %arg5[%7, %c0_4, %c0_5] : memref<4x128x128xbf16, #tpu.memory_space<vmem>>, vector<1x128x128xbf16>
    %9 = vector.shape_cast %8 : vector<1x128x128xbf16> to vector<128x128xbf16>
    %cst = arith.constant dense<0.000000e+00> : vector<8x128xf32>
    %10 = tpu.matmul %6, %9, %cst {dimension_numbers = #tpu.dot_dimension_numbers<[1], [0], [0], [1], [0, 0, 1, 1], [], []>} : vector<8x128xbf16>, vector<128x128xbf16>, vector<8x128xf32> -> vector<8x128xf32>
    %11 = arith.index_cast %arg2 : i32 to index
    %c0_6 = arith.constant 0 : index
    %c0_7 = arith.constant 0 : index
    %12 = vector.load %arg6[%11, %c0_6, %c0_7] : memref<4x1x128xf32, #tpu.memory_space<vmem>>, vector<1x1x128xf32>
    %13 = vector.shape_cast %12 : vector<1x1x128xf32> to vector<1x128xf32>
    %14 = vector.broadcast %13 : vector<1x128xf32> to vector<8x128xf32>
    %15 = arith.addf %10, %14 : vector<8x128xf32>
    %16 = arith.truncf %15 : vector<8x128xf32> to vector<8x128xbf16>
    %17 = arith.index_cast %arg2 : i32 to index
    %c0_8 = arith.constant 0 : index
    %c0_9 = arith.constant 0 : index
    %18 = vector.load %arg14[%17, %c0_8, %c0_9] : memref<4x8x128xbf16, #tpu.memory_space<vmem>>, vector<1x8x128xbf16>
    %19 = vector.shape_cast %18 : vector<1x8x128xbf16> to vector<8x128xbf16>
    %20 = arith.index_cast %arg2 : i32 to index
    %c0_10 = arith.constant 0 : index
    %c0_11 = arith.constant 0 : index
    %21 = vector.load %arg15[%20, %c0_10, %c0_11] : memref<4x8x128xbf16, #tpu.memory_space<vmem>>, vector<1x8x128xbf16>
    %22 = vector.shape_cast %21 : vector<1x8x128xbf16> to vector<8x128xbf16>
    %cst_12 = arith.constant dense<0.000000e+00> : vector<8x8xf32>
    %23 = tpu.matmul %16, %19, %cst_12 {dimension_numbers = #tpu.dot_dimension_numbers<[1], [1], [0], [0], [0, 0, 1, 0], [], []>} : vector<8x128xbf16>, vector<8x128xbf16>, vector<8x8xf32> -> vector<8x8xf32>
    %cst_13 = arith.constant dense<0xFF800000> : vector<8xf32>
    %24 = vector.multi_reduction <maximumf>, %23, %cst_13 [1] : vector<8x8xf32> to vector<8xf32>
    %25 = vector.shape_cast %24 : vector<8xf32> to vector<8x1xf32>
    %26 = vector.broadcast %25 : vector<8x1xf32> to vector<8x8xf32>
    %27 = arith.subf %23, %26 : vector<8x8xf32>
    %28 = math.exp %27 : vector<8x8xf32>
    %cst_14 = arith.constant dense<0.000000e+00> : vector<8xf32>
    %29 = vector.multi_reduction <add>, %28, %cst_14 [1] : vector<8x8xf32> to vector<8xf32>
    %30 = vector.shape_cast %29 : vector<8xf32> to vector<8x1xf32>
    %31 = arith.truncf %28 : vector<8x8xf32> to vector<8x8xbf16>
    %cst_15 = arith.constant dense<0.000000e+00> : vector<8x128xf32>
    %32 = tpu.matmul %31, %22, %cst_15 {dimension_numbers = #tpu.dot_dimension_numbers<[1], [0], [0], [1], [0, 0, 1, 1], [], []>} : vector<8x8xbf16>, vector<8x128xbf16>, vector<8x128xf32> -> vector<8x128xf32>
    %cst_16 = arith.constant 1.000000e+00 : f32
    %33 = vector.broadcast %cst_16 : f32 to vector<8x1xf32>
    %34 = arith.divf %33, %30 : vector<8x1xf32>
    %35 = vector.broadcast %34 : vector<8x1xf32> to vector<8x128xf32>
    %36 = arith.mulf %32, %35 : vector<8x128xf32>
    %c0_17 = arith.constant 0 : index
    %c0_18 = arith.constant 0 : index
    %37 = vector.load %arg16[%c0_17, %c0_18] : memref<8x128xf32, #tpu.memory_space<vmem>>, vector<8x128xf32>
    %38 = arith.truncf %36 : vector<8x128xf32> to vector<8x128xbf16>
    %39 = arith.index_cast %arg2 : i32 to index
    %c0_19 = arith.constant 0 : index
    %c0_20 = arith.constant 0 : index
    %40 = vector.load %arg9[%39, %c0_19, %c0_20] : memref<4x128x128xbf16, #tpu.memory_space<vmem>>, vector<1x128x128xbf16>
    %41 = vector.shape_cast %40 : vector<1x128x128xbf16> to vector<128x128xbf16>
    %cst_21 = arith.constant dense<0.000000e+00> : vector<8x128xf32>
    %42 = tpu.matmul %38, %41, %cst_21 {dimension_numbers = #tpu.dot_dimension_numbers<[1], [0], [0], [1], [0, 0, 1, 1], [], []>} : vector<8x128xbf16>, vector<128x128xbf16>, vector<8x128xf32> -> vector<8x128xf32>
    %43 = arith.addf %37, %42 : vector<8x128xf32>
    %c0_22 = arith.constant 0 : index
    %c0_23 = arith.constant 0 : index
    %44 = vector.load %arg16[%c0_22, %c0_23] : memref<8x128xf32, #tpu.memory_space<vmem>>, vector<8x128xf32>
    tpu.vector_store %arg16[%c0_22, %c0_23], %43 {strides = array<i32>} : memref<8x128xf32, #tpu.memory_space<vmem>>, vector<8x128xf32>,
    %c3_i32 = arith.constant 3 : i32
    %45 = arith.cmpi eq, %arg2, %c3_i32 : i32
    %46 = arith.extui %45 : i1 to i32
    %c0_i32_24 = arith.constant 0 : i32
    %47 = arith.cmpi ne, %46, %c0_i32_24 : i32
    scf.if %47 {
      %c0_25 = arith.constant 0 : index
      %c0_26 = arith.constant 0 : index
      %48 = vector.load %arg16[%c0_25, %c0_26] : memref<8x128xf32, #tpu.memory_space<vmem>>, vector<8x128xf32>
      %c0_27 = arith.constant 0 : index
      %c0_28 = arith.constant 0 : index
      %49 = vector.load %arg10[%c0_27, %c0_28] : memref<1x128xf32, #tpu.memory_space<vmem>>, vector<1x128xf32>
      %50 = vector.broadcast %49 : vector<1x128xf32> to vector<8x128xf32>
      %51 = arith.addf %48, %50 : vector<8x128xf32>
      %c0_29 = arith.constant 0 : index
      %c0_30 = arith.constant 0 : index
      %c0_31 = arith.constant 0 : index
      %52 = vector.load %arg3[%c0_29, %c0_30, %c0_31] : memref<1x8x128xf32, #tpu.memory_space<vmem>>, vector<1x8x128xf32>
      %53 = vector.shape_cast %52 : vector<1x8x128xf32> to vector<8x128xf32>
      %54 = arith.addf %53, %51 : vector<8x128xf32>
      %cst_32 = arith.constant dense<0.000000e+00> : vector<8xf32>
      %55 = vector.multi_reduction <add>, %54, %cst_32 [1] : vector<8x128xf32> to vector<8xf32>
      %56 = vector.shape_cast %55 : vector<8xf32> to vector<8x1xf32>
      %cst_33 = arith.constant 3.125000e-02 : f32
      %57 = vector.broadcast %cst_33 : f32 to vector<8x1xf32>
      %58 = arith.mulf %56, %57 : vector<8x1xf32>
      %59 = vector.broadcast %58 : vector<8x1xf32> to vector<8x128xf32>
      %60 = arith.subf %54, %59 : vector<8x128xf32>
      %61 = arith.mulf %60, %60 : vector<8x128xf32>
      %cst_34 = arith.constant dense<0.000000e+00> : vector<8xf32>
      %62 = vector.multi_reduction <add>, %61, %cst_34 [1] : vector<8x128xf32> to vector<8xf32>
      %63 = vector.shape_cast %62 : vector<8xf32> to vector<8x1xf32>
      %cst_35 = arith.constant 9.600000e+01 : f32
      %64 = vector.broadcast %cst_35 : f32 to vector<8x1xf32>
      %65 = arith.mulf %64, %58 : vector<8x1xf32>
      %66 = arith.mulf %65, %58 : vector<8x1xf32>
      %67 = arith.subf %63, %66 : vector<8x1xf32>
      %cst_36 = arith.constant 3.125000e-02 : f32
      %68 = vector.broadcast %cst_36 : f32 to vector<8x1xf32>
      %69 = arith.mulf %67, %68 : vector<8x1xf32>
      %cst_37 = arith.constant 9.99999974E-6 : f32
      %70 = vector.broadcast %cst_37 : f32 to vector<8x1xf32>
      %71 = arith.addf %69, %70 : vector<8x1xf32>
      %72 = math.rsqrt %71 : vector<8x1xf32>
      %73 = vector.broadcast %72 : vector<8x1xf32> to vector<8x128xf32>
      %74 = arith.mulf %60, %73 : vector<8x128xf32>
      %c0_38 = arith.constant 0 : index
      %c0_39 = arith.constant 0 : index
      %75 = vector.load %arg11[%c0_38, %c0_39] : memref<1x128xf32, #tpu.memory_space<vmem>>, vector<1x128xf32>
      %76 = vector.broadcast %75 : vector<1x128xf32> to vector<8x128xf32>
      %77 = arith.mulf %74, %76 : vector<8x128xf32>
      %c0_40 = arith.constant 0 : index
      %c0_41 = arith.constant 0 : index
      %78 = vector.load %arg12[%c0_40, %c0_41] : memref<1x128xf32, #tpu.memory_space<vmem>>, vector<1x128xf32>
      %79 = vector.broadcast %78 : vector<1x128xf32> to vector<8x128xf32>
      %80 = arith.addf %77, %79 : vector<8x128xf32>
      %c0_42 = arith.constant 0 : index
      %c0_43 = arith.constant 0 : index
      %c0_44 = arith.constant 0 : index
      %81 = vector.load %arg13[%c0_42, %c0_43, %c0_44] : memref<1x8x128xf32, #tpu.memory_space<vmem>>, vector<1x8x128xf32>
      %82 = vector.shape_cast %81 : vector<1x8x128xf32> to vector<8x128xf32>
      %83 = vector.shape_cast %80 : vector<8x128xf32> to vector<1x8x128xf32>
      tpu.vector_store %arg13[%c0_42, %c0_43, %c0_44], %83 {strides = array<i32>} : memref<1x8x128xf32, #tpu.memory_space<vmem>>, vector<1x8x128xf32>,
    } else {
    }
    return
  }
  func.func @transform_0(%arg0: i32, %arg1: i32, %arg2: i32) -> (i32, i32, i32) {
    %c0_i32 = arith.constant 0 : i32
    %c0_i32_0 = arith.constant 0 : i32
    return %arg0, %arg1, %c0_i32 : i32, i32, i32
  }
  func.func @transform_1(%arg0: i32, %arg1: i32, %arg2: i32) -> (i32, i32, i32) {
    %c0_i32 = arith.constant 0 : i32
    %c0_i32_0 = arith.constant 0 : i32
    %c0_i32_1 = arith.constant 0 : i32
    return %arg0, %c0_i32, %c0_i32_0 : i32, i32, i32
  }
  func.func @transform_2(%arg0: i32, %arg1: i32, %arg2: i32) -> (i32, i32, i32) {
    %c0_i32 = arith.constant 0 : i32
    %c0_i32_0 = arith.constant 0 : i32
    %c0_i32_1 = arith.constant 0 : i32
    %c0_i32_2 = arith.constant 0 : i32
    return %c0_i32, %c0_i32_0, %c0_i32_1 : i32, i32, i32
  }
  func.func @transform_3(%arg0: i32, %arg1: i32, %arg2: i32) -> (i32, i32, i32) {
    %c0_i32 = arith.constant 0 : i32
    %c0_i32_0 = arith.constant 0 : i32
    %c0_i32_1 = arith.constant 0 : i32
    %c0_i32_2 = arith.constant 0 : i32
    return %c0_i32, %c0_i32_0, %c0_i32_1 : i32, i32, i32
  }
  func.func @transform_4(%arg0: i32, %arg1: i32, %arg2: i32) -> (i32, i32, i32) {
    %c0_i32 = arith.constant 0 : i32
    %c0_i32_0 = arith.constant 0 : i32
    %c0_i32_1 = arith.constant 0 : i32
    %c0_i32_2 = arith.constant 0 : i32
    return %c0_i32, %c0_i32_0, %c0_i32_1 : i32, i32, i32
  }
  func.func @transform_5(%arg0: i32, %arg1: i32, %arg2: i32) -> (i32, i32, i32) {
    %c0_i32 = arith.constant 0 : i32
    %c0_i32_0 = arith.constant 0 : i32
    %c0_i32_1 = arith.constant 0 : i32
    %c0_i32_2 = arith.constant 0 : i32
    return %c0_i32, %c0_i32_0, %c0_i32_1 : i32, i32, i32
  }
  func.func @transform_6(%arg0: i32, %arg1: i32, %arg2: i32) -> (i32, i32, i32) {
    %c0_i32 = arith.constant 0 : i32
    %c0_i32_0 = arith.constant 0 : i32
    %c0_i32_1 = arith.constant 0 : i32
    %c0_i32_2 = arith.constant 0 : i32
    return %c0_i32, %c0_i32_0, %c0_i32_1 : i32, i32, i32
  }
  func.func @transform_7(%arg0: i32, %arg1: i32, %arg2: i32) -> (i32, i32) {
    %c0_i32 = arith.constant 0 : i32
    %c0_i32_0 = arith.constant 0 : i32
    %c0_i32_1 = arith.constant 0 : i32
    return %c0_i32, %c0_i32_0 : i32, i32
  }
  func.func @transform_8(%arg0: i32, %arg1: i32, %arg2: i32) -> (i32, i32) {
    %c0_i32 = arith.constant 0 : i32
    %c0_i32_0 = arith.constant 0 : i32
    %c0_i32_1 = arith.constant 0 : i32
    return %c0_i32, %c0_i32_0 : i32, i32
  }
  func.func @transform_9(%arg0: i32, %arg1: i32, %arg2: i32) -> (i32, i32) {
    %c0_i32 = arith.constant 0 : i32
    %c0_i32_0 = arith.constant 0 : i32
    %c0_i32_1 = arith.constant 0 : i32
    return %c0_i32, %c0_i32_0 : i32, i32
  }
  func.func @transform_10(%arg0: i32, %arg1: i32, %arg2: i32) -> (i32, i32, i32) {
    %c0_i32 = arith.constant 0 : i32
    %c0_i32_0 = arith.constant 0 : i32
    return %arg0, %arg1, %c0_i32 : i32, i32, i32
  }
}

module attributes {stable_mosaic.version = 11 : i64} {
  func.func @_mha_addnorm_kernel(%arg0: i32, %arg1: i32, %arg2: i32, %arg3: memref<1x8x128xf32, #tpu.memory_space<vmem>>, %arg4: memref<1x8x128xbf16, #tpu.memory_space<vmem>>, %arg5: memref<4x128x128xbf16, #tpu.memory_space<vmem>>, %arg6: memref<4x1x128xf32, #tpu.memory_space<vmem>>, %arg7: memref<4x128x256xbf16, #tpu.memory_space<vmem>>, %arg8: memref<4x1x256xf32, #tpu.memory_space<vmem>>, %arg9: memref<4x128x128xbf16, #tpu.memory_space<vmem>>, %arg10: memref<1x128xf32, #tpu.memory_space<vmem>>, %arg11: memref<1x128xf32, #tpu.memory_space<vmem>>, %arg12: memref<1x128xf32, #tpu.memory_space<vmem>>, %arg13: memref<1x8x128xf32, #tpu.memory_space<vmem>>, %arg14: memref<4x8x128xbf16, #tpu.memory_space<vmem>>, %arg15: memref<4x8x128xbf16, #tpu.memory_space<vmem>>, %arg16: memref<8x128xf32, #tpu.memory_space<vmem>>, %arg17: memref<8x128xbf16, #tpu.memory_space<vmem>>) attributes {dimension_semantics = [#tpu.dimension_semantics<parallel>, #tpu.dimension_semantics<arbitrary>, #tpu.dimension_semantics<arbitrary>], iteration_bounds = array<i64: 2, 1, 4>, scalar_prefetch = 0 : i64, scratch_operands = 4 : i64, tpu.core_type = #tpu.core_type<tc>, window_params = [{transform_indices = @transform_0, window_bounds = array<i64: 1, 8, 128>}, {transform_indices = @transform_1, window_bounds = array<i64: 1, 8, 128>}, {pipeline_mode = #tpu.pipeline_mode<synchronous>, transform_indices = @transform_2, window_bounds = array<i64: 4, 128, 128>}, {pipeline_mode = #tpu.pipeline_mode<synchronous>, transform_indices = @transform_3, window_bounds = array<i64: 4, 1, 128>}, {pipeline_mode = #tpu.pipeline_mode<synchronous>, transform_indices = @transform_4, window_bounds = array<i64: 4, 128, 256>}, {pipeline_mode = #tpu.pipeline_mode<synchronous>, transform_indices = @transform_5, window_bounds = array<i64: 4, 1, 256>}, {pipeline_mode = #tpu.pipeline_mode<synchronous>, transform_indices = @transform_6, window_bounds = array<i64: 4, 128, 128>}, {pipeline_mode = #tpu.pipeline_mode<synchronous>, transform_indices = @transform_7, window_bounds = array<i64: 1, 128>}, {pipeline_mode = #tpu.pipeline_mode<synchronous>, transform_indices = @transform_8, window_bounds = array<i64: 1, 128>}, {pipeline_mode = #tpu.pipeline_mode<synchronous>, transform_indices = @transform_9, window_bounds = array<i64: 1, 128>}, {transform_indices = @transform_10, window_bounds = array<i64: 1, 8, 128>}]} {
    %c0_i32 = arith.constant 0 : i32
    %0 = arith.cmpi eq, %arg2, %c0_i32 : i32
    %1 = arith.extui %0 : i1 to i32
    %c0_i32_0 = arith.constant 0 : i32
    %2 = arith.cmpi ne, %1, %c0_i32_0 : i32
    scf.if %2 {
      %c0_25 = arith.constant 0 : index
      %c0_26 = arith.constant 0 : index
      %c0_27 = arith.constant 0 : index
      %48 = vector.load %arg3[%c0_25, %c0_26, %c0_27] : memref<1x8x128xf32, #tpu.memory_space<vmem>>, vector<1x8x128xf32>
      %49 = vector.shape_cast %48 : vector<1x8x128xf32> to vector<8x128xf32>
      %50 = arith.truncf %49 : vector<8x128xf32> to vector<8x128xbf16>
      %c0_28 = arith.constant 0 : index
      %c0_29 = arith.constant 0 : index
      %51 = vector.load %arg17[%c0_28, %c0_29] : memref<8x128xbf16, #tpu.memory_space<vmem>>, vector<8x128xbf16>
      tpu.vector_store %arg17[%c0_28, %c0_29], %50 {strides = array<i32>} : memref<8x128xbf16, #tpu.memory_space<vmem>>, vector<8x128xbf16>,
      %cst_30 = arith.constant 0.000000e+00 : f32
      %52 = vector.broadcast %cst_30 : f32 to vector<8x128xf32>
      %c0_31 = arith.constant 0 : index
      %c0_32 = arith.constant 0 : index
      %53 = vector.load %arg16[%c0_31, %c0_32] : memref<8x128xf32, #tpu.memory_space<vmem>>, vector<8x128xf32>
      tpu.vector_store %arg16[%c0_31, %c0_32], %52 {strides = array<i32>} : memref<8x128xf32, #tpu.memory_space<vmem>>, vector<8x128xf32>,
    } else {
    }
    %c0_i32_1 = arith.constant 0 : i32
    %3 = arith.cmpi eq, %arg1, %c0_i32_1 : i32
    %4 = arith.extui %3 : i1 to i32
    %c0_i32_2 = arith.constant 0 : i32
    %5 = arith.cmpi ne, %4, %c0_i32_2 : i32
    scf.if %5 {
      %c0_25 = arith.constant 0 : index
      %c0_26 = arith.constant 0 : index
      %c0_27 = arith.constant 0 : index
      %48 = vector.load %arg4[%c0_25, %c0_26, %c0_27] : memref<1x8x128xbf16, #tpu.memory_space<vmem>>, vector<1x8x128xbf16>
      %49 = vector.shape_cast %48 : vector<1x8x128xbf16> to vector<8x128xbf16>
      %50 = arith.index_cast %arg2 : i32 to index
      %c0_28 = arith.constant 0 : index
      %c0_29 = arith.constant 0 : index
      %51 = vector.load %arg7[%50, %c0_28, %c0_29] : memref<4x128x256xbf16, #tpu.memory_space<vmem>>, vector<1x128x256xbf16>
      %52 = vector.shape_cast %51 : vector<1x128x256xbf16> to vector<128x256xbf16>
      %cst_30 = arith.constant dense<0.000000e+00> : vector<8x256xf32>
      %53 = tpu.matmul %49, %52, %cst_30 {dimension_numbers = #tpu.dot_dimension_numbers<[1], [0], [0], [1], [0, 0, 1, 1], [], []>} : vector<8x128xbf16>, vector<128x256xbf16>, vector<8x256xf32> -> vector<8x256xf32>
      %54 = arith.index_cast %arg2 : i32 to index
      %c0_31 = arith.constant 0 : index
      %c0_32 = arith.constant 0 : index
      %55 = vector.load %arg8[%54, %c0_31, %c0_32] : memref<4x1x256xf32, #tpu.memory_space<vmem>>, vector<1x1x256xf32>
      %56 = vector.shape_cast %55 : vector<1x1x256xf32> to vector<1x256xf32>
      %57 = vector.broadcast %56 : vector<1x256xf32> to vector<8x256xf32>
      %58 = arith.addf %53, %57 : vector<8x256xf32>
      %59 = vector.extract_strided_slice %58 {offsets = [0, 0], sizes = [8, 128], strides = [1, 1]} : vector<8x256xf32> to vector<8x128xf32>
      %60 = arith.truncf %59 : vector<8x128xf32> to vector<8x128xbf16>
      %61 = arith.index_cast %arg2 : i32 to index
      %c0_33 = arith.constant 0 : index
      %c0_34 = arith.constant 0 : index
      %62 = vector.load %arg14[%61, %c0_33, %c0_34] : memref<4x8x128xbf16, #tpu.memory_space<vmem>>, vector<1x8x128xbf16>
      %63 = vector.shape_cast %62 : vector<1x8x128xbf16> to vector<8x128xbf16>
      %64 = vector.shape_cast %60 : vector<8x128xbf16> to vector<1x8x128xbf16>
      tpu.vector_store %arg14[%61, %c0_33, %c0_34], %64 {strides = array<i32>} : memref<4x8x128xbf16, #tpu.memory_space<vmem>>, vector<1x8x128xbf16>,
      %65 = vector.extract_strided_slice %58 {offsets = [0, 128], sizes = [8, 128], strides = [1, 1]} : vector<8x256xf32> to vector<8x128xf32>
      %66 = arith.truncf %65 : vector<8x128xf32> to vector<8x128xbf16>
      %67 = arith.index_cast %arg2 : i32 to index
      %c0_35 = arith.constant 0 : index
      %c0_36 = arith.constant 0 : index
      %68 = vector.load %arg15[%67, %c0_35, %c0_36] : memref<4x8x128xbf16, #tpu.memory_space<vmem>>, vector<1x8x128xbf16>
      %69 = vector.shape_cast %68 : vector<1x8x128xbf16> to vector<8x128xbf16>
      %70 = vector.shape_cast %66 : vector<8x128xbf16> to vector<1x8x128xbf16>
      tpu.vector_store %arg15[%67, %c0_35, %c0_36], %70 {strides = array<i32>} : memref<4x8x128xbf16, #tpu.memory_space<vmem>>, vector<1x8x128xbf16>,
    } else {
    }
    %c0 = arith.constant 0 : index
    %c0_3 = arith.constant 0 : index
    %6 = vector.load %arg17[%c0, %c0_3] : memref<8x128xbf16, #tpu.memory_space<vmem>>, vector<8x128xbf16>
    %7 = arith.index_cast %arg2 : i32 to index
    %c0_4 = arith.constant 0 : index
    %c0_5 = arith.constant 0 : index
    %8 = vector.load %arg5[%7, %c0_4, %c0_5] : memref<4x128x128xbf16, #tpu.memory_space<vmem>>, vector<1x128x128xbf16>
    %9 = vector.shape_cast %8 : vector<1x128x128xbf16> to vector<128x128xbf16>
    %cst = arith.constant dense<0.000000e+00> : vector<8x128xf32>
    %10 = tpu.matmul %6, %9, %cst {dimension_numbers = #tpu.dot_dimension_numbers<[1], [0], [0], [1], [0, 0, 1, 1], [], []>} : vector<8x128xbf16>, vector<128x128xbf16>, vector<8x128xf32> -> vector<8x128xf32>
    %11 = arith.index_cast %arg2 : i32 to index
    %c0_6 = arith.constant 0 : index
    %c0_7 = arith.constant 0 : index
    %12 = vector.load %arg6[%11, %c0_6, %c0_7] : memref<4x1x128xf32, #tpu.memory_space<vmem>>, vector<1x1x128xf32>
    %13 = vector.shape_cast %12 : vector<1x1x128xf32> to vector<1x128xf32>
    %14 = vector.broadcast %13 : vector<1x128xf32> to vector<8x128xf32>
    %15 = arith.addf %10, %14 : vector<8x128xf32>
    %16 = arith.truncf %15 : vector<8x128xf32> to vector<8x128xbf16>
    %17 = arith.index_cast %arg2 : i32 to index
    %c0_8 = arith.constant 0 : index
    %c0_9 = arith.constant 0 : index
    %18 = vector.load %arg14[%17, %c0_8, %c0_9] : memref<4x8x128xbf16, #tpu.memory_space<vmem>>, vector<1x8x128xbf16>
    %19 = vector.shape_cast %18 : vector<1x8x128xbf16> to vector<8x128xbf16>
    %20 = arith.index_cast %arg2 : i32 to index
    %c0_10 = arith.constant 0 : index
    %c0_11 = arith.constant 0 : index
    %21 = vector.load %arg15[%20, %c0_10, %c0_11] : memref<4x8x128xbf16, #tpu.memory_space<vmem>>, vector<1x8x128xbf16>
    %22 = vector.shape_cast %21 : vector<1x8x128xbf16> to vector<8x128xbf16>
    %cst_12 = arith.constant dense<0.000000e+00> : vector<8x8xf32>
    %23 = tpu.matmul %16, %19, %cst_12 {dimension_numbers = #tpu.dot_dimension_numbers<[1], [1], [0], [0], [0, 0, 1, 0], [], []>} : vector<8x128xbf16>, vector<8x128xbf16>, vector<8x8xf32> -> vector<8x8xf32>
    %cst_13 = arith.constant dense<0xFF800000> : vector<8xf32>
    %24 = vector.multi_reduction <maximumf>, %23, %cst_13 [1] : vector<8x8xf32> to vector<8xf32>
    %25 = vector.shape_cast %24 : vector<8xf32> to vector<8x1xf32>
    %26 = vector.broadcast %25 : vector<8x1xf32> to vector<8x8xf32>
    %27 = arith.subf %23, %26 : vector<8x8xf32>
    %28 = math.exp %27 : vector<8x8xf32>
    %cst_14 = arith.constant dense<0.000000e+00> : vector<8xf32>
    %29 = vector.multi_reduction <add>, %28, %cst_14 [1] : vector<8x8xf32> to vector<8xf32>
    %30 = vector.shape_cast %29 : vector<8xf32> to vector<8x1xf32>
    %31 = arith.truncf %28 : vector<8x8xf32> to vector<8x8xbf16>
    %cst_15 = arith.constant dense<0.000000e+00> : vector<8x128xf32>
    %32 = tpu.matmul %31, %22, %cst_15 {dimension_numbers = #tpu.dot_dimension_numbers<[1], [0], [0], [1], [0, 0, 1, 1], [], []>} : vector<8x8xbf16>, vector<8x128xbf16>, vector<8x128xf32> -> vector<8x128xf32>
    %cst_16 = arith.constant 1.000000e+00 : f32
    %33 = vector.broadcast %cst_16 : f32 to vector<8x1xf32>
    %34 = arith.divf %33, %30 : vector<8x1xf32>
    %35 = vector.broadcast %34 : vector<8x1xf32> to vector<8x128xf32>
    %36 = arith.mulf %32, %35 : vector<8x128xf32>
    %c0_17 = arith.constant 0 : index
    %c0_18 = arith.constant 0 : index
    %37 = vector.load %arg16[%c0_17, %c0_18] : memref<8x128xf32, #tpu.memory_space<vmem>>, vector<8x128xf32>
    %38 = arith.truncf %36 : vector<8x128xf32> to vector<8x128xbf16>
    %39 = arith.index_cast %arg2 : i32 to index
    %c0_19 = arith.constant 0 : index
    %c0_20 = arith.constant 0 : index
    %40 = vector.load %arg9[%39, %c0_19, %c0_20] : memref<4x128x128xbf16, #tpu.memory_space<vmem>>, vector<1x128x128xbf16>
    %41 = vector.shape_cast %40 : vector<1x128x128xbf16> to vector<128x128xbf16>
    %cst_21 = arith.constant dense<0.000000e+00> : vector<8x128xf32>
    %42 = tpu.matmul %38, %41, %cst_21 {dimension_numbers = #tpu.dot_dimension_numbers<[1], [0], [0], [1], [0, 0, 1, 1], [], []>} : vector<8x128xbf16>, vector<128x128xbf16>, vector<8x128xf32> -> vector<8x128xf32>
    %43 = arith.addf %37, %42 : vector<8x128xf32>
    %c0_22 = arith.constant 0 : index
    %c0_23 = arith.constant 0 : index
    %44 = vector.load %arg16[%c0_22, %c0_23] : memref<8x128xf32, #tpu.memory_space<vmem>>, vector<8x128xf32>
    tpu.vector_store %arg16[%c0_22, %c0_23], %43 {strides = array<i32>} : memref<8x128xf32, #tpu.memory_space<vmem>>, vector<8x128xf32>,
    %c3_i32 = arith.constant 3 : i32
    %45 = arith.cmpi eq, %arg2, %c3_i32 : i32
    %46 = arith.extui %45 : i1 to i32
    %c0_i32_24 = arith.constant 0 : i32
    %47 = arith.cmpi ne, %46, %c0_i32_24 : i32
    scf.if %47 {
      %c0_25 = arith.constant 0 : index
      %c0_26 = arith.constant 0 : index
      %48 = vector.load %arg16[%c0_25, %c0_26] : memref<8x128xf32, #tpu.memory_space<vmem>>, vector<8x128xf32>
      %c0_27 = arith.constant 0 : index
      %c0_28 = arith.constant 0 : index
      %49 = vector.load %arg10[%c0_27, %c0_28] : memref<1x128xf32, #tpu.memory_space<vmem>>, vector<1x128xf32>
      %50 = vector.broadcast %49 : vector<1x128xf32> to vector<8x128xf32>
      %51 = arith.addf %48, %50 : vector<8x128xf32>
      %c0_29 = arith.constant 0 : index
      %c0_30 = arith.constant 0 : index
      %c0_31 = arith.constant 0 : index
      %52 = vector.load %arg3[%c0_29, %c0_30, %c0_31] : memref<1x8x128xf32, #tpu.memory_space<vmem>>, vector<1x8x128xf32>
      %53 = vector.shape_cast %52 : vector<1x8x128xf32> to vector<8x128xf32>
      %54 = arith.addf %53, %51 : vector<8x128xf32>
      %cst_32 = arith.constant dense<0.000000e+00> : vector<8xf32>
      %55 = vector.multi_reduction <add>, %54, %cst_32 [1] : vector<8x128xf32> to vector<8xf32>
      %56 = vector.shape_cast %55 : vector<8xf32> to vector<8x1xf32>
      %cst_33 = arith.constant 3.125000e-02 : f32
      %57 = vector.broadcast %cst_33 : f32 to vector<8x1xf32>
      %58 = arith.mulf %56, %57 : vector<8x1xf32>
      %59 = vector.broadcast %58 : vector<8x1xf32> to vector<8x128xf32>
      %60 = arith.subf %54, %59 : vector<8x128xf32>
      %61 = arith.mulf %60, %60 : vector<8x128xf32>
      %cst_34 = arith.constant dense<0.000000e+00> : vector<8xf32>
      %62 = vector.multi_reduction <add>, %61, %cst_34 [1] : vector<8x128xf32> to vector<8xf32>
      %63 = vector.shape_cast %62 : vector<8xf32> to vector<8x1xf32>
      %cst_35 = arith.constant 9.600000e+01 : f32
      %64 = vector.broadcast %cst_35 : f32 to vector<8x1xf32>
      %65 = arith.mulf %64, %58 : vector<8x1xf32>
      %66 = arith.mulf %65, %58 : vector<8x1xf32>
      %67 = arith.subf %63, %66 : vector<8x1xf32>
      %cst_36 = arith.constant 3.125000e-02 : f32
      %68 = vector.broadcast %cst_36 : f32 to vector<8x1xf32>
      %69 = arith.mulf %67, %68 : vector<8x1xf32>
      %cst_37 = arith.constant 9.99999974E-6 : f32
      %70 = vector.broadcast %cst_37 : f32 to vector<8x1xf32>
      %71 = arith.addf %69, %70 : vector<8x1xf32>
      %72 = math.rsqrt %71 : vector<8x1xf32>
      %73 = vector.broadcast %72 : vector<8x1xf32> to vector<8x128xf32>
      %74 = arith.mulf %60, %73 : vector<8x128xf32>
      %c0_38 = arith.constant 0 : index
      %c0_39 = arith.constant 0 : index
      %75 = vector.load %arg11[%c0_38, %c0_39] : memref<1x128xf32, #tpu.memory_space<vmem>>, vector<1x128xf32>
      %76 = vector.broadcast %75 : vector<1x128xf32> to vector<8x128xf32>
      %77 = arith.mulf %74, %76 : vector<8x128xf32>
      %c0_40 = arith.constant 0 : index
      %c0_41 = arith.constant 0 : index
      %78 = vector.load %arg12[%c0_40, %c0_41] : memref<1x128xf32, #tpu.memory_space<vmem>>, vector<1x128xf32>
      %79 = vector.broadcast %78 : vector<1x128xf32> to vector<8x128xf32>
      %80 = arith.addf %77, %79 : vector<8x128xf32>
      %c0_42 = arith.constant 0 : index
      %c0_43 = arith.constant 0 : index
      %c0_44 = arith.constant 0 : index
      %81 = vector.load %arg13[%c0_42, %c0_43, %c0_44] : memref<1x8x128xf32, #tpu.memory_space<vmem>>, vector<1x8x128xf32>
      %82 = vector.shape_cast %81 : vector<1x8x128xf32> to vector<8x128xf32>
      %83 = vector.shape_cast %80 : vector<8x128xf32> to vector<1x8x128xf32>
      tpu.vector_store %arg13[%c0_42, %c0_43, %c0_44], %83 {strides = array<i32>} : memref<1x8x128xf32, #tpu.memory_space<vmem>>, vector<1x8x128xf32>,
    } else {
    }
    return
  }
  func.func @transform_0(%arg0: i32, %arg1: i32, %arg2: i32) -> (i32, i32, i32) {
    %c0_i32 = arith.constant 0 : i32
    %c0_i32_0 = arith.constant 0 : i32
    return %arg0, %arg1, %c0_i32 : i32, i32, i32
  }
  func.func @transform_1(%arg0: i32, %arg1: i32, %arg2: i32) -> (i32, i32, i32) {
    %c0_i32 = arith.constant 0 : i32
    %c0_i32_0 = arith.constant 0 : i32
    %c0_i32_1 = arith.constant 0 : i32
    return %arg0, %c0_i32, %c0_i32_0 : i32, i32, i32
  }
  func.func @transform_2(%arg0: i32, %arg1: i32, %arg2: i32) -> (i32, i32, i32) {
    %c0_i32 = arith.constant 0 : i32
    %c0_i32_0 = arith.constant 0 : i32
    %c0_i32_1 = arith.constant 0 : i32
    %c0_i32_2 = arith.constant 0 : i32
    return %c0_i32, %c0_i32_0, %c0_i32_1 : i32, i32, i32
  }
  func.func @transform_3(%arg0: i32, %arg1: i32, %arg2: i32) -> (i32, i32, i32) {
    %c0_i32 = arith.constant 0 : i32
    %c0_i32_0 = arith.constant 0 : i32
    %c0_i32_1 = arith.constant 0 : i32
    %c0_i32_2 = arith.constant 0 : i32
    return %c0_i32, %c0_i32_0, %c0_i32_1 : i32, i32, i32
  }
  func.func @transform_4(%arg0: i32, %arg1: i32, %arg2: i32) -> (i32, i32, i32) {
    %c0_i32 = arith.constant 0 : i32
    %c0_i32_0 = arith.constant 0 : i32
    %c0_i32_1 = arith.constant 0 : i32
    %c0_i32_2 = arith.constant 0 : i32
    return %c0_i32, %c0_i32_0, %c0_i32_1 : i32, i32, i32
  }
  func.func @transform_5(%arg0: i32, %arg1: i32, %arg2: i32) -> (i32, i32, i32) {
    %c0_i32 = arith.constant 0 : i32
    %c0_i32_0 = arith.constant 0 : i32
    %c0_i32_1 = arith.constant 0 : i32
    %c0_i32_2 = arith.constant 0 : i32
    return %c0_i32, %c0_i32_0, %c0_i32_1 : i32, i32, i32
  }
  func.func @transform_6(%arg0: i32, %arg1: i32, %arg2: i32) -> (i32, i32, i32) {
    %c0_i32 = arith.constant 0 : i32
    %c0_i32_0 = arith.constant 0 : i32
    %c0_i32_1 = arith.constant 0 : i32
    %c0_i32_2 = arith.constant 0 : i32
    return %c0_i32, %c0_i32_0, %c0_i32_1 : i32, i32, i32
  }
  func.func @transform_7(%arg0: i32, %arg1: i32, %arg2: i32) -> (i32, i32) {
    %c0_i32 = arith.constant 0 : i32
    %c0_i32_0 = arith.constant 0 : i32
    %c0_i32_1 = arith.constant 0 : i32
    return %c0_i32, %c0_i32_0 : i32, i32
  }
  func.func @transform_8(%arg0: i32, %arg1: i32, %arg2: i32) -> (i32, i32) {
    %c0_i32 = arith.constant 0 : i32
    %c0_i32_0 = arith.constant 0 : i32
    %c0_i32_1 = arith.constant 0 : i32
    return %c0_i32, %c0_i32_0 : i32, i32
  }
  func.func @transform_9(%arg0: i32, %arg1: i32, %arg2: i32) -> (i32, i32) {
    %c0_i32 = arith.constant 0 : i32
    %c0_i32_0 = arith.constant 0 : i32
    %c0_i32_1 = arith.constant 0 : i32
    return %c0_i32, %c0_i32_0 : i32, i32
  }
  func.func @transform_10(%arg0: i32, %arg1: i32, %arg2: i32) -> (i32, i32, i32) {
    %c0_i32 = arith.constant 0 : i32
    %c0_i32_0 = arith.constant 0 : i32
    return %arg0, %arg1, %c0_i32 : i32, i32, i32
  }
}

</mosaic_0001>

<llo_original>
// kernel: tpu_custom_call.1
$region0: #{tpu_custom_call.1}
  #allocation0 [shape = 'u32[]', space=smem, size = 0x4, offset = 0x4, fixed_abs, tag = 'smem constant byte address 0x4 - core index']
  #allocation1 [shape = 'u32[72,128]{1,0:T(1,128)}', space=vmem, size = 0x9000, scoped, tag = 'internal scratch']
  #allocation2 [shape = 'bf16[4,8,128]{2,1,0:T(8,128)(2,1)}', space=vmem, size = 0x2000, scoped, tag = 'scratch operand']
  #allocation3 [shape = 'bf16[4,8,128]{2,1,0:T(8,128)(2,1)}', space=vmem, size = 0x2000, scoped, tag = 'scratch operand']
  #allocation4 [shape = 'f32[8,128]{1,0:T(8,128)}', space=vmem, size = 0x1000, scoped, tag = 'scratch operand']
  #allocation5 [shape = 'bf16[8,128]{1,0:T(8,128)(2,1)}', space=vmem, size = 0x800, scoped, tag = 'scratch operand']
  %s0 = inlined_call_operand.hbm [shape: f32[2,8,128], index: 0, kind: input, shape index: {}]
  %s1 = inlined_call_operand.hbm [shape: bf16[2,8,128], index: 1, kind: input, shape index: {}]
  %s2 = inlined_call_operand.hbm [shape: bf16[4,128,128], index: 2, kind: input, shape index: {}]
  %s3 = inlined_call_operand.hbm [shape: f32[4,1,128], index: 3, kind: input, shape index: {}]
  %s4 = inlined_call_operand.hbm [shape: bf16[4,128,256], index: 4, kind: input, shape index: {}]
  %s5 = inlined_call_operand.hbm [shape: f32[4,1,256], index: 5, kind: input, shape index: {}]
  %s6 = inlined_call_operand.hbm [shape: bf16[4,128,128], index: 6, kind: input, shape index: {}]
  %s7 = inlined_call_operand.vmem [shape: f32[1,128], index: 7, kind: input, shape index: {}]
  %s8 = inlined_call_operand.vmem [shape: f32[1,128], index: 8, kind: input, shape index: {}]
  %s9 = inlined_call_operand.vmem [shape: f32[1,128], index: 9, kind: input, shape index: {}]
  %s10 = inlined_call_operand.hbm [shape: f32[2,8,128], index: 10, kind: output, shape index: {}]
  %s11 = sld [smem:[#allocation0]]
  $region113: #{tpu_custom_call.1} parent=0
    _
  %s13 = ssub.s32 1, %s11
  %s14 = scalar_select 0, %s13, %s11
  $region1: #{tpu_custom_call.1} parent=0
    #allocation6 [shape = 'u8[8192]{0}', space=vmem, size = 0x2000, scoped, tag = 'input window, operand 0']
    #allocation7 [shape = 's32[2]{0}', space=sflag, size = 0x8, scoped, tag = 'scoped memory for tpu_custom_call.1']
    #allocation8 [shape = 's32[2]{0}', space=sflag, size = 0x8, scoped, tag = 'scoped memory for tpu_custom_call.1']
    #allocation9 [shape = 'u8[2048]{0}', space=vmem, size = 0x800, scoped, tag = 'input window, operand 1, single buffered']
    #allocation10 [shape = 's32[1]{0}', space=sflag, size = 0x4, scoped, tag = 'scoped memory for tpu_custom_call.1']
    #allocation11 [shape = 'u8[131072]{0}', space=vmem, size = 0x20000, scoped, tag = 'input window, operand 2, single buffered']
    #allocation12 [shape = 'u8[2048]{0}', space=vmem, size = 0x800, scoped, tag = 'input window, operand 3, single buffered']
    #allocation13 [shape = 's32[1]{0}', space=sflag, size = 0x4, scoped, tag = 'scoped memory for tpu_custom_call.1']
    #allocation14 [shape = 'u8[262144]{0}', space=vmem, size = 0x40000, scoped, tag = 'input window, operand 4, single buffered']
    #allocation15 [shape = 'u8[4096]{0}', space=vmem, size = 0x1000, scoped, tag = 'input window, operand 5, single buffered']
    #allocation16 [shape = 's32[1]{0}', space=sflag, size = 0x4, scoped, tag = 'scoped memory for tpu_custom_call.1']
    #allocation17 [shape = 'u8[131072]{0}', space=vmem, size = 0x20000, scoped, tag = 'input window, operand 6, single buffered']
    #allocation18 [shape = 'u8[8192]{0}', space=vmem, size = 0x2000, scoped, tag = 'output window, operand 0']
    %15 = vsyncpa [#allocation7], 0
    %s16 = scalar_lea.sflag [#allocation7], 1
    %17 = vsyncpa %s16, 0
    %18 = vsyncpa [#allocation10], 0
    %19 = vsyncpa [#allocation13], 0
    %20 = vsyncpa [#allocation16], 0
    %21 = vsyncpa [#allocation8], 0
    %s22 = scalar_lea.sflag [#allocation8], 1
    %23 = vsyncpa %s22, 0
    loop: start=0, step=1, limit=10
    $region2: #{tpu_custom_call.1} parent=1 // loop_pre_header
      _
    $region3: #{tpu_custom_call.1} parent=1 // loop_header
      %s25 = sphi 0, %s29
      %p26 = scmp.ge.s32.totalorder %s25, 10
      %s32 = sphi 0, %s51
      %s33 = sphi 0, %s47
      %s34 = sphi 0, %s43
      %s35 = sphi 0, %s32
      %s36 = sphi 0, %s33
      %s37 = sphi 0, %s34
      %s38 = sphi 0, %s35
      %s39 = sphi 0, %s36
      %s40 = sphi 0, %s37
      %s56 = sphi 0, %s58
      %s59 = sphi 0, %s56
      %s60 = sphi 0, %s59
      %s76 = sphi 0, %s60
      %s82 = sphi 0, %s84
      %s85 = sphi 0, %s82
      %s86 = sphi 0, %s85
      %s102 = sphi 0, %s86
      %s106 = sphi 0, %s106
      %s108 = sphi 0, %s106
      %s109 = sphi 0, %s108
      %s123 = sphi 0, %s109
      %s127 = sphi 0, %s127
      %s129 = sphi 0, %s127
      %s130 = sphi 0, %s129
      %s144 = sphi 0, %s130
      %s148 = sphi 0, %s148
      %s150 = sphi 0, %s148
      %s151 = sphi 0, %s150
      %s165 = sphi 0, %s151
      %s169 = sphi 0, %s169
      %s171 = sphi 0, %s169
      %s172 = sphi 0, %s171
      %s186 = sphi 0, %s172
      %s190 = sphi 0, %s190
      %s192 = sphi 0, %s190
      %s193 = sphi 0, %s192
      %s207 = sphi 0, %s193
      %s211 = sphi 0, %s211
      %s213 = sphi 0, %s211
      %s214 = sphi 0, %s213
      %s228 = sphi 0, %s214
      %s232 = sphi 0, %s232
      %s234 = sphi 0, %s232
      %s235 = sphi 0, %s234
      %s249 = sphi 0, %s235
      %s253 = sphi 0, %s253
      %s255 = sphi 0, %s253
      %s256 = sphi 0, %s255
      %s270 = sphi 0, %s256
      %s278 = sphi 0, %s280
      %s281 = sphi 0, %s278
      %s282 = sphi 0, %s281
      %s298 = sphi 0, %s282
    $region4: #{tpu_custom_call.1} parent=1 // loop_header_branch
      %28 = sbr.rel (%p26) target = $region8
    $region5: #{tpu_custom_call.1} parent=1 // loop_body
      %s30 = ssub.s32 %s25, 1
      %s31 = ssub.s32 %s25, 2
      %s41 = sadd.s32 1, %s34
      %p42 = scmp.ge.s32.totalorder %s41, 4
      %s43 = scalar_select %p42, 0, %s41
      %s44 = sadd.s32 1, %s33
      %s45 = scalar_select %p42, %s44, %s33
      %p46 = scmp.ge.s32.totalorder %s45, 1
      %s47 = scalar_select %p46, 0, %s45
      %s48 = sadd.s32 1, %s32
      %s49 = scalar_select %p46, %s48, %s32
      %p50 = scmp.ge.s32.totalorder %s49, 2
      %s51 = scalar_select %p50, 0, %s49
      %s52 = ssub.s32 %s32, %s51
      %s53 = ssub.s32 %s33, %s47
      %s54 = sor.u32 %s52, %s53
      %p55 = scmp.eq.s32.totalorder %s54, 0
      %s57 = sadd.s32 %s56, 1
      %s58 = scalar_select %p55, %s56, %s57
      %p61 = pneg %p55
      %p62 = scmp.eq.s32.totalorder %s25, 7
      %p63 = por %p61, %p62
      %p64 = scmp.ne.s32.totalorder %s56, %s59
      %p65 = scmp.eq.s32.totalorder %s25, 0
      %p66 = por %p64, %p65
      %p67 = scmp.ne.s32.totalorder %s56, %s59
      %p68 = scmp.eq.s32.totalorder %s30, 7
      %p69 = por %p67, %p68
      %p70 = scmp.ne.s32.totalorder %s59, %s60
      %p71 = scmp.eq.s32.totalorder %s30, 0
      %p72 = por %p70, %p71
      %p73 = scmp.ne.s32.totalorder %s59, %s60
      %p74 = scmp.eq.s32.totalorder %s31, 7
      %p75 = por %p73, %p74
      %p77 = scmp.ne.s32.totalorder %s60, %s76
      %p78 = scmp.eq.s32.totalorder %s31, 0
      %p79 = por %p77, %p78
      %s80 = ssub.s32 %s32, %s51
      %p81 = scmp.eq.s32.totalorder %s80, 0
      %s83 = sadd.s32 %s82, 1
      %s84 = scalar_select %p81, %s82, %s83
      %p87 = pneg %p81
      %p88 = scmp.eq.s32.totalorder %s25, 7
      %p89 = por %p87, %p88
      %p90 = scmp.ne.s32.totalorder %s82, %s85
      %p91 = scmp.eq.s32.totalorder %s25, 0
      %p92 = por %p90, %p91
      %p93 = scmp.ne.s32.totalorder %s82, %s85
      %p94 = scmp.eq.s32.totalorder %s30, 7
      %p95 = por %p93, %p94
      %p96 = scmp.ne.s32.totalorder %s85, %s86
      %p97 = scmp.eq.s32.totalorder %s30, 0
      %p98 = por %p96, %p97
      %p99 = scmp.ne.s32.totalorder %s85, %s86
      %p100 = scmp.eq.s32.totalorder %s31, 7
      %p101 = por %p99, %p100
      %p103 = scmp.ne.s32.totalorder %s86, %s102
      %p104 = scmp.eq.s32.totalorder %s31, 0
      %p105 = por %p103, %p104
      %s107 = sadd.s32 %s106, 1
      %p110 = scmp.eq.s32.totalorder %s25, 7
      %p111 = scmp.ne.s32.totalorder %s106, %s108
      %p112 = scmp.eq.s32.totalorder %s25, 0
      %p113 = por %p111, %p112
      %p114 = scmp.ne.s32.totalorder %s106, %s108
      %p115 = scmp.eq.s32.totalorder %s30, 7
      %p116 = por %p114, %p115
      %p117 = scmp.ne.s32.totalorder %s108, %s109
      %p118 = scmp.eq.s32.totalorder %s30, 0
      %p119 = por %p117, %p118
      %p120 = scmp.ne.s32.totalorder %s108, %s109
      %p121 = scmp.eq.s32.totalorder %s31, 7
      %p122 = por %p120, %p121
      %p124 = scmp.ne.s32.totalorder %s109, %s123
      %p125 = scmp.eq.s32.totalorder %s31, 0
      %p126 = por %p124, %p125
      %s128 = sadd.s32 %s127, 1
      %p131 = scmp.eq.s32.totalorder %s25, 7
      %p132 = scmp.ne.s32.totalorder %s127, %s129
      %p133 = scmp.eq.s32.totalorder %s25, 0
      %p134 = por %p132, %p133
      %p135 = scmp.ne.s32.totalorder %s127, %s129
      %p136 = scmp.eq.s32.totalorder %s30, 7
      %p137 = por %p135, %p136
      %p138 = scmp.ne.s32.totalorder %s129, %s130
      %p139 = scmp.eq.s32.totalorder %s30, 0
      %p140 = por %p138, %p139
      %p141 = scmp.ne.s32.totalorder %s129, %s130
      %p142 = scmp.eq.s32.totalorder %s31, 7
      %p143 = por %p141, %p142
      %p145 = scmp.ne.s32.totalorder %s130, %s144
      %p146 = scmp.eq.s32.totalorder %s31, 0
      %p147 = por %p145, %p146
      %s149 = sadd.s32 %s148, 1
      %p152 = scmp.eq.s32.totalorder %s25, 7
      %p153 = scmp.ne.s32.totalorder %s148, %s150
      %p154 = scmp.eq.s32.totalorder %s25, 0
      %p155 = por %p153, %p154
      %p156 = scmp.ne.s32.totalorder %s148, %s150
      %p157 = scmp.eq.s32.totalorder %s30, 7
      %p158 = por %p156, %p157
      %p159 = scmp.ne.s32.totalorder %s150, %s151
      %p160 = scmp.eq.s32.totalorder %s30, 0
      %p161 = por %p159, %p160
      %p162 = scmp.ne.s32.totalorder %s150, %s151
      %p163 = scmp.eq.s32.totalorder %s31, 7
      %p164 = por %p162, %p163
      %p166 = scmp.ne.s32.totalorder %s151, %s165
      %p167 = scmp.eq.s32.totalorder %s31, 0
      %p168 = por %p166, %p167
      %s170 = sadd.s32 %s169, 1
      %p173 = scmp.eq.s32.totalorder %s25, 7
      %p174 = scmp.ne.s32.totalorder %s169, %s171
      %p175 = scmp.eq.s32.totalorder %s25, 0
      %p176 = por %p174, %p175
      %p177 = scmp.ne.s32.totalorder %s169, %s171
      %p178 = scmp.eq.s32.totalorder %s30, 7
      %p179 = por %p177, %p178
      %p180 = scmp.ne.s32.totalorder %s171, %s172
      %p181 = scmp.eq.s32.totalorder %s30, 0
      %p182 = por %p180, %p181
      %p183 = scmp.ne.s32.totalorder %s171, %s172
      %p184 = scmp.eq.s32.totalorder %s31, 7
      %p185 = por %p183, %p184
      %p187 = scmp.ne.s32.totalorder %s172, %s186
      %p188 = scmp.eq.s32.totalorder %s31, 0
      %p189 = por %p187, %p188
      %s191 = sadd.s32 %s190, 1
      %p194 = scmp.eq.s32.totalorder %s25, 7
      %p195 = scmp.ne.s32.totalorder %s190, %s192
      %p196 = scmp.eq.s32.totalorder %s25, 0
      %p197 = por %p195, %p196
      %p198 = scmp.ne.s32.totalorder %s190, %s192
      %p199 = scmp.eq.s32.totalorder %s30, 7
      %p200 = por %p198, %p199
      %p201 = scmp.ne.s32.totalorder %s192, %s193
      %p202 = scmp.eq.s32.totalorder %s30, 0
      %p203 = por %p201, %p202
      %p204 = scmp.ne.s32.totalorder %s192, %s193
      %p205 = scmp.eq.s32.totalorder %s31, 7
      %p206 = por %p204, %p205
      %p208 = scmp.ne.s32.totalorder %s193, %s207
      %p209 = scmp.eq.s32.totalorder %s31, 0
      %p210 = por %p208, %p209
      %s212 = sadd.s32 %s211, 1
      %p215 = scmp.eq.s32.totalorder %s25, 7
      %p216 = scmp.ne.s32.totalorder %s211, %s213
      %p217 = scmp.eq.s32.totalorder %s25, 0
      %p218 = por %p216, %p217
      %p219 = scmp.ne.s32.totalorder %s211, %s213
      %p220 = scmp.eq.s32.totalorder %s30, 7
      %p221 = por %p219, %p220
      %p222 = scmp.ne.s32.totalorder %s213, %s214
      %p223 = scmp.eq.s32.totalorder %s30, 0
      %p224 = por %p222, %p223
      %p225 = scmp.ne.s32.totalorder %s213, %s214
      %p226 = scmp.eq.s32.totalorder %s31, 7
      %p227 = por %p225, %p226
      %p229 = scmp.ne.s32.totalorder %s214, %s228
      %p230 = scmp.eq.s32.totalorder %s31, 0
      %p231 = por %p229, %p230
      %s233 = sadd.s32 %s232, 1
      %p236 = scmp.eq.s32.totalorder %s25, 7
      %p237 = scmp.ne.s32.totalorder %s232, %s234
      %p238 = scmp.eq.s32.totalorder %s25, 0
      %p239 = por %p237, %p238
      %p240 = scmp.ne.s32.totalorder %s232, %s234
      %p241 = scmp.eq.s32.totalorder %s30, 7
      %p242 = por %p240, %p241
      %p243 = scmp.ne.s32.totalorder %s234, %s235
      %p244 = scmp.eq.s32.totalorder %s30, 0
      %p245 = por %p243, %p244
      %p246 = scmp.ne.s32.totalorder %s234, %s235
      %p247 = scmp.eq.s32.totalorder %s31, 7
      %p248 = por %p246, %p247
      %p250 = scmp.ne.s32.totalorder %s235, %s249
      %p251 = scmp.eq.s32.totalorder %s31, 0
      %p252 = por %p250, %p251
      %s254 = sadd.s32 %s253, 1
      %p257 = scmp.eq.s32.totalorder %s25, 7
      %p258 = scmp.ne.s32.totalorder %s253, %s255
      %p259 = scmp.eq.s32.totalorder %s25, 0
      %p260 = por %p258, %p259
      %p261 = scmp.ne.s32.totalorder %s253, %s255
      %p262 = scmp.eq.s32.totalorder %s30, 7
      %p263 = por %p261, %p262
      %p264 = scmp.ne.s32.totalorder %s255, %s256
      %p265 = scmp.eq.s32.totalorder %s30, 0
      %p266 = por %p264, %p265
      %p267 = scmp.ne.s32.totalorder %s255, %s256
      %p268 = scmp.eq.s32.totalorder %s31, 7
      %p269 = por %p267, %p268
      %p271 = scmp.ne.s32.totalorder %s256, %s270
      %p272 = scmp.eq.s32.totalorder %s31, 0
      %p273 = por %p271, %p272
      %s274 = ssub.s32 %s32, %s51
      %s275 = ssub.s32 %s33, %s47
      %s276 = sor.u32 %s274, %s275
      %p277 = scmp.eq.s32.totalorder %s276, 0
      %s279 = sadd.s32 %s278, 1
      %s280 = scalar_select %p277, %s278, %s279
      %p283 = pneg %p277
      %p284 = scmp.eq.s32.totalorder %s25, 7
      %p285 = por %p283, %p284
      %p286 = scmp.ne.s32.totalorder %s278, %s281
      %p287 = scmp.eq.s32.totalorder %s25, 0
      %p288 = por %p286, %p287
      %p289 = scmp.ne.s32.totalorder %s278, %s281
      %p290 = scmp.eq.s32.totalorder %s30, 7
      %p291 = por %p289, %p290
      %p292 = scmp.ne.s32.totalorder %s281, %s282
      %p293 = scmp.eq.s32.totalorder %s30, 0
      %p294 = por %p292, %p293
      %p295 = scmp.ne.s32.totalorder %s281, %s282
      %p296 = scmp.eq.s32.totalorder %s31, 7
      %p297 = por %p295, %p296
      %p299 = scmp.ne.s32.totalorder %s282, %s298
      %p300 = scmp.eq.s32.totalorder %s31, 0
      %p301 = por %p299, %p300
      %p302 = scmp.le.s32.totalorder 1, %s25
      %p303 = scmp.lt.s32.totalorder %s25, 9
      %p304 = pnand %p302, %p303
      %p305 = pneg %p304
      // Predicated region
      $region9: #{tpu_custom_call.1} parent=5 // pred_check
        _
      $region10: #{tpu_custom_call.1} parent=5 // pred_check_branch
        %307 = sbr.rel (%p304) target = $region12
      $region11: #{tpu_custom_call.1} parent=5 // pred_region
        %s308 = ssub.s32 %s25, 1
        // Predicated region
        $region13: #{tpu_custom_call.1} parent=11 // pred_check
          %p309 = pneg %p98
        $region14: #{tpu_custom_call.1} parent=11 // pred_check_branch
          %311 = sbr.rel (%p309) target = $region16
        $region15: #{tpu_custom_call.1} parent=11 // pred_region
          %313 = vsyncadd [#allocation10], 0
          %s314 = smul.addr %s35, 4
          %s315 = scalar_lea.hbm %s1, %s314
          %s317 = sshll.u32 %s315, 4
          %s318 = int_to_ptr.hbm [resolvable:$true] %s317
          %s319 = sshll.u32 [#allocation9], 4
          %s320 = int_to_ptr.vmem [resolvable:$true] %s319
          %322 = dma.hbm_to_vmem [thread:$0]  %s318, 64, %s320, [#allocation10]
        $region16: #{tpu_custom_call.1} parent=11 // pred_fallthru
          _
        // Predicated region
        $region17: #{tpu_custom_call.1} parent=11 // pred_check
          %p323 = pneg %p119
        $region18: #{tpu_custom_call.1} parent=11 // pred_check_branch
          %325 = sbr.rel (%p323) target = $region20
        $region19: #{tpu_custom_call.1} parent=11 // pred_region
          %327 = vsyncadd [#allocation10], 0
          %s328 = sshll.u32 %s2, 4
          %s329 = int_to_ptr.hbm [resolvable:$true] %s328
          %s330 = sshll.u32 [#allocation11], 4
          %s331 = int_to_ptr.vmem [resolvable:$true] %s330
          %336 = dma.hbm_to_vmem [thread:$0]  %s329, 4096, %s331, [#allocation10], 64, 64, 4
        $region20: #{tpu_custom_call.1} parent=11 // pred_fallthru
          _
        // Predicated region
        $region21: #{tpu_custom_call.1} parent=11 // pred_check
          %p337 = pneg %p140
        $region22: #{tpu_custom_call.1} parent=11 // pred_check_branch
          %339 = sbr.rel (%p337) target = $region24
        $region23: #{tpu_custom_call.1} parent=11 // pred_region
          %341 = vsyncadd [#allocation13], 0
          %s342 = sshll.u32 %s3, 4
          %s343 = int_to_ptr.hbm [resolvable:$true] %s342
          %s344 = sshll.u32 [#allocation12], 4
          %s345 = int_to_ptr.vmem [resolvable:$true] %s344
          %350 = dma.hbm_to_vmem [thread:$0]  %s343, 64, %s345, [#allocation13], 16, 16, 1
        $region24: #{tpu_custom_call.1} parent=11 // pred_fallthru
          _
        // Predicated region
        $region25: #{tpu_custom_call.1} parent=11 // pred_check
          %p351 = pneg %p161
        $region26: #{tpu_custom_call.1} parent=11 // pred_check_branch
          %353 = sbr.rel (%p351) target = $region28
        $region27: #{tpu_custom_call.1} parent=11 // pred_region
          %355 = vsyncadd [#allocation13], 0
          %s356 = sshll.u32 %s4, 4
          %s357 = int_to_ptr.hbm [resolvable:$true] %s356
          %s358 = sshll.u32 [#allocation14], 4
          %s359 = int_to_ptr.vmem [resolvable:$true] %s358
          %364 = dma.hbm_to_vmem [thread:$0]  %s357, 8192, %s359, [#allocation13], 128, 128, 8
        $region28: #{tpu_custom_call.1} parent=11 // pred_fallthru
          _
        // Predicated region
        $region29: #{tpu_custom_call.1} parent=11 // pred_check
          %p365 = pneg %p182
        $region30: #{tpu_custom_call.1} parent=11 // pred_check_branch
          %367 = sbr.rel (%p365) target = $region32
        $region31: #{tpu_custom_call.1} parent=11 // pred_region
          %369 = vsyncadd [#allocation16], 0
          %s370 = sshll.u32 %s5, 4
          %s371 = int_to_ptr.hbm [resolvable:$true] %s370
          %s372 = sshll.u32 [#allocation15], 4
          %s373 = int_to_ptr.vmem [resolvable:$true] %s372
          %378 = dma.hbm_to_vmem [thread:$0]  %s371, 128, %s373, [#allocation16], 32, 32, 2
        $region32: #{tpu_custom_call.1} parent=11 // pred_fallthru
          _
        // Predicated region
        $region33: #{tpu_custom_call.1} parent=11 // pred_check
          %p379 = pneg %p203
        $region34: #{tpu_custom_call.1} parent=11 // pred_check_branch
          %381 = sbr.rel (%p379) target = $region36
        $region35: #{tpu_custom_call.1} parent=11 // pred_region
          %383 = vsyncadd [#allocation16], 0
          %s384 = sshll.u32 %s6, 4
          %s385 = int_to_ptr.hbm [resolvable:$true] %s384
          %s386 = sshll.u32 [#allocation17], 4
          %s387 = int_to_ptr.vmem [resolvable:$true] %s386
          %392 = dma.hbm_to_vmem [thread:$0]  %s385, 4096, %s387, [#allocation16], 64, 64, 4
        $region36: #{tpu_custom_call.1} parent=11 // pred_fallthru
          _
        // Predicated region
        $region37: #{tpu_custom_call.1} parent=11 // pred_check
          %p393 = pneg %p224
        $region38: #{tpu_custom_call.1} parent=11 // pred_check_branch
          %395 = sbr.rel (%p393) target = $region40
        $region39: #{tpu_custom_call.1} parent=11 // pred_region
          _
        $region40: #{tpu_custom_call.1} parent=11 // pred_fallthru
          _
        // Predicated region
        $region41: #{tpu_custom_call.1} parent=11 // pred_check
          %p396 = pneg %p245
        $region42: #{tpu_custom_call.1} parent=11 // pred_check_branch
          %398 = sbr.rel (%p396) target = $region44
        $region43: #{tpu_custom_call.1} parent=11 // pred_region
          _
        $region44: #{tpu_custom_call.1} parent=11 // pred_fallthru
          _
        // Predicated region
        $region45: #{tpu_custom_call.1} parent=11 // pred_check
          %p399 = pneg %p266
        $region46: #{tpu_custom_call.1} parent=11 // pred_check_branch
          %401 = sbr.rel (%p399) target = $region48
        $region47: #{tpu_custom_call.1} parent=11 // pred_region
          _
        $region48: #{tpu_custom_call.1} parent=11 // pred_fallthru
          _
      $region12: #{tpu_custom_call.1} parent=5 // pred_fallthru
        _
      %p402 = scmp.lt.s32.totalorder %s25, 8
      // Predicated region
      $region49: #{tpu_custom_call.1} parent=5 // pred_check
        %p403 = pneg %p402
      $region50: #{tpu_custom_call.1} parent=5 // pred_check_branch
        %405 = sbr.rel (%p403) target = $region52
      $region51: #{tpu_custom_call.1} parent=5 // pred_region
        // Predicated region
        $region53: #{tpu_custom_call.1} parent=51 // pred_check
          %p406 = pneg %p66
        $region54: #{tpu_custom_call.1} parent=51 // pred_check_branch
          %408 = sbr.rel (%p406) target = $region56
        $region55: #{tpu_custom_call.1} parent=51 // pred_region
          %s409 = sand.u32 %s56, 1
          %s410 = scalar_lea.sflag [#allocation7], %s409
          %s411 = sand.u32 %s56, 1
          %s412 = smul.addr %s411, 8
          %s413 = scalar_lea.vmem [#allocation6], %s412
          %415 = vsyncadd %s410, 0
          %s416 = sadd.s32 %s33, %s32
          %s417 = smul.addr %s416, 8
          %s418 = scalar_lea.hbm %s0, %s417
          %s420 = sshll.u32 %s418, 4
          %s421 = int_to_ptr.hbm [resolvable:$true] %s420
          %s422 = sshll.u32 %s413, 4
          %s423 = int_to_ptr.vmem [resolvable:$true] %s422
          %425 = dma.hbm_to_vmem [thread:$0]  %s421, 128, %s423, %s410
        $region56: #{tpu_custom_call.1} parent=51 // pred_fallthru
          _
      $region52: #{tpu_custom_call.1} parent=5 // pred_fallthru
        _
      %p426 = scmp.le.s32.totalorder 1, %s25
      %p427 = scmp.lt.s32.totalorder %s25, 9
      %p428 = pnand %p426, %p427
      %p429 = pneg %p428
      // Predicated region
      $region57: #{tpu_custom_call.1} parent=5 // pred_check
        _
      $region58: #{tpu_custom_call.1} parent=5 // pred_check_branch
        %431 = sbr.rel (%p428) target = $region60
      $region59: #{tpu_custom_call.1} parent=5 // pred_region
        %s432 = ssub.s32 %s25, 1
        %s433 = sand.u32 %s59, 1
        %s434 = scalar_lea.sflag [#allocation7], %s433
        %s435 = sand.u32 %s59, 1
        %s436 = smul.addr %s435, 8
        %s437 = scalar_lea.vmem [#allocation6], %s436
        // Predicated region
        $region61: #{tpu_custom_call.1} parent=59 // pred_check
          %p438 = pneg %p72
        $region62: #{tpu_custom_call.1} parent=59 // pred_check_branch
          %440 = sbr.rel (%p438) target = $region64
        $region63: #{tpu_custom_call.1} parent=59 // pred_region
          %442 = dma.done %s434, 128
        $region64: #{tpu_custom_call.1} parent=59 // pred_fallthru
          _
        // Predicated region
        $region65: #{tpu_custom_call.1} parent=59 // pred_check
          %p443 = pneg %p98
        $region66: #{tpu_custom_call.1} parent=59 // pred_check_branch
          %445 = sbr.rel (%p443) target = $region68
        $region67: #{tpu_custom_call.1} parent=59 // pred_region
          %447 = dma.done [#allocation10], 64
        $region68: #{tpu_custom_call.1} parent=59 // pred_fallthru
          _
        // Predicated region
        $region69: #{tpu_custom_call.1} parent=59 // pred_check
          %p448 = pneg %p119
        $region70: #{tpu_custom_call.1} parent=59 // pred_check_branch
          %450 = sbr.rel (%p448) target = $region72
        $region71: #{tpu_custom_call.1} parent=59 // pred_region
          %452 = dma.done [#allocation10], 4096
        $region72: #{tpu_custom_call.1} parent=59 // pred_fallthru
          _
        // Predicated region
        $region73: #{tpu_custom_call.1} parent=59 // pred_check
          %p453 = pneg %p140
        $region74: #{tpu_custom_call.1} parent=59 // pred_check_branch
          %455 = sbr.rel (%p453) target = $region76
        $region75: #{tpu_custom_call.1} parent=59 // pred_region
          %457 = dma.done [#allocation13], 64
        $region76: #{tpu_custom_call.1} parent=59 // pred_fallthru
          _
        // Predicated region
        $region77: #{tpu_custom_call.1} parent=59 // pred_check
          %p458 = pneg %p161
        $region78: #{tpu_custom_call.1} parent=59 // pred_check_branch
          %460 = sbr.rel (%p458) target = $region80
        $region79: #{tpu_custom_call.1} parent=59 // pred_region
          %462 = dma.done [#allocation13], 8192
        $region80: #{tpu_custom_call.1} parent=59 // pred_fallthru
          _
        // Predicated region
        $region81: #{tpu_custom_call.1} parent=59 // pred_check
          %p463 = pneg %p182
        $region82: #{tpu_custom_call.1} parent=59 // pred_check_branch
          %465 = sbr.rel (%p463) target = $region84
        $region83: #{tpu_custom_call.1} parent=59 // pred_region
          %467 = dma.done [#allocation16], 128
        $region84: #{tpu_custom_call.1} parent=59 // pred_fallthru
          _
        // Predicated region
        $region85: #{tpu_custom_call.1} parent=59 // pred_check
          %p468 = pneg %p203
        $region86: #{tpu_custom_call.1} parent=59 // pred_check_branch
          %470 = sbr.rel (%p468) target = $region88
        $region87: #{tpu_custom_call.1} parent=59 // pred_region
          %472 = dma.done [#allocation16], 4096
        $region88: #{tpu_custom_call.1} parent=59 // pred_fallthru
          _
        %s473 = sand.u32 %s59, 1
        %s474 = scalar_lea.sflag [#allocation7], %s473
        %s475 = sand.u32 %s59, 1
        %s476 = smul.addr %s475, 8
        %s477 = scalar_lea.vmem [#allocation6], %s476
        %p478 = pneg %p72
        %p479 = pneg %p69
        %p480 = pneg %p98
        %p481 = pneg %p95
        %p482 = pneg %p119
        %p483 = pneg %p116
        %p484 = pneg %p140
        %p485 = pneg %p137
        %p486 = pneg %p161
        %p487 = pneg %p158
        %p488 = pneg %p182
        %p489 = pneg %p179
        %p490 = pneg %p203
        %p491 = pneg %p200
        %p492 = pneg %p224
        %p493 = pneg %p221
        %p494 = pneg %p245
        %p495 = pneg %p242
        %p496 = pneg %p266
        %p497 = pneg %p263
        %p498 = pneg %p294
        %p499 = pneg %p291
        %s500 = sand.u32 %s281, 1
        %s501 = scalar_lea.sflag [#allocation8], %s500
        %s502 = sand.u32 %s281, 1
        %s503 = smul.addr %s502, 8
        %s504 = scalar_lea.vmem [#allocation18], %s503
        %p506 = scmp.eq.s32.totalorder %s37, 0
        // Predicated region
        $region89: #{tpu_custom_call.1} parent=59 // pred_check
          %p507 = pneg %p506
        $region90: #{tpu_custom_call.1} parent=59 // pred_check_branch
          %509 = sbr.rel (%p507) target = $region92
        $region91: #{tpu_custom_call.1} parent=59 // pred_region
          %v510 = vld [vmem:[%s437] sm:$0xff]
          %v511 = vpack.c.bf16 %v510, %v510
          %512 = vst [vmem:[#allocation5] sm:$0xf] %v511
          %513 = vst [vmem:[#allocation4] sm:$0xff] 0.0
        $region92: #{tpu_custom_call.1} parent=59 // pred_fallthru
          _
        %p514 = scmp.eq.s32.totalorder %s36, 0
        // Predicated region
        $region93: #{tpu_custom_call.1} parent=59 // pred_check
          %p515 = pneg %p514
        $region94: #{tpu_custom_call.1} parent=59 // pred_check_branch
          %517 = sbr.rel (%p515) target = $region96
        $region95: #{tpu_custom_call.1} parent=59 // pred_region
          %v518 = vld [vmem:[#allocation9] sm:$0xf]
          %s519 = smul.u32 %s37, 32
          %s520 = smul.addr %s519, 4
          %s521 = scalar_lea.vmem [#allocation14], %s520
          %v522 = vld [vmem:[%s521] sm:$0xff]
          %v523 = vld [vmem:[%s521 + $0x8] sm:$0xff]
          %v524 = vld [vmem:[%s521 + $0x10] sm:$0xff]
          %v525 = vld [vmem:[%s521 + $0x18] sm:$0xff]
          %v526 = vld [vmem:[%s521 + $0x20] sm:$0xff]
          %v527 = vld [vmem:[%s521 + $0x28] sm:$0xff]
          %v528 = vld [vmem:[%s521 + $0x30] sm:$0xff]
          %v529 = vld [vmem:[%s521 + $0x38] sm:$0xff]
          %v530 = vld [vmem:[%s521 + $0x40] sm:$0xff]
          %v531 = vld [vmem:[%s521 + $0x48] sm:$0xff]
          %v532 = vld [vmem:[%s521 + $0x50] sm:$0xff]
          %v533 = vld [vmem:[%s521 + $0x58] sm:$0xff]
          %v534 = vld [vmem:[%s521 + $0x60] sm:$0xff]
          %v535 = vld [vmem:[%s521 + $0x68] sm:$0xff]
          %v536 = vld [vmem:[%s521 + $0x70] sm:$0xff]
          %v537 = vld [vmem:[%s521 + $0x78] sm:$0xff]
          %s538 = smul.u32 %s37, 2
          %s539 = scalar_lea.vmem [#allocation15], %s538
          %v540 = vld [vmem:[%s539] sm:$0x3]
          %v542 = vperm.slane %v540, 0
          %v543 = vperm.slane %v540, 1
          %v562 = vunpack.c.l.b16 %v522
          %v563 = vunpack.c.h.b16 %v522
          %v564 = vunpack.c.l.b16 %v523
          %v565 = vunpack.c.h.b16 %v523
          %v566 = vunpack.c.l.b16 %v524
          %v567 = vunpack.c.h.b16 %v524
          %v568 = vunpack.c.l.b16 %v525
          %v569 = vunpack.c.h.b16 %v525
          %v570 = vunpack.c.l.b16 %v526
          %v571 = vunpack.c.h.b16 %v526
          %v572 = vunpack.c.l.b16 %v527
          %v573 = vunpack.c.h.b16 %v527
          %v574 = vunpack.c.l.b16 %v528
          %v575 = vunpack.c.h.b16 %v528
          %v576 = vunpack.c.l.b16 %v529
          %v577 = vunpack.c.h.b16 %v529
          %v578 = vunpack.c.l.b16 %v530
          %v579 = vunpack.c.h.b16 %v530
          %v580 = vunpack.c.l.b16 %v531
          %v581 = vunpack.c.h.b16 %v531
          %v582 = vunpack.c.l.b16 %v532
          %v583 = vunpack.c.h.b16 %v532
          %v584 = vunpack.c.l.b16 %v533
          %v585 = vunpack.c.h.b16 %v533
          %v586 = vunpack.c.l.b16 %v534
          %v587 = vunpack.c.h.b16 %v534
          %v588 = vunpack.c.l.b16 %v535
          %v589 = vunpack.c.h.b16 %v535
          %v590 = vunpack.c.l.b16 %v536
          %v591 = vunpack.c.h.b16 %v536
          %v592 = vunpack.c.l.b16 %v537
          %v593 = vunpack.c.h.b16 %v537
          %v594 = vpack.c.b16 %v564, %v562
          %v595 = vpack.c.b16 %v565, %v563
          %v596 = vpack.c.b16 %v568, %v566
          %v597 = vpack.c.b16 %v569, %v567
          %v598 = vpack.c.b16 %v572, %v570
          %v599 = vpack.c.b16 %v573, %v571
          %v600 = vpack.c.b16 %v576, %v574
          %v601 = vpack.c.b16 %v577, %v575
          %v602 = vpack.c.b16 %v580, %v578
          %v603 = vpack.c.b16 %v581, %v579
          %v604 = vpack.c.b16 %v584, %v582
          %v605 = vpack.c.b16 %v585, %v583
          %v606 = vpack.c.b16 %v588, %v586
          %v607 = vpack.c.b16 %v589, %v587
          %v608 = vpack.c.b16 %v592, %v590
          %v609 = vpack.c.b16 %v593, %v591
          %626 = vmatpush.bf16.msra.mxu0 %v608
          %627 = vmatpush.bf16.msra.mxu0 %v606
          %628 = vmatpush.bf16.msra.mxu0 %v604
          %629 = vmatpush.bf16.msra.mxu0 %v602
          %630 = vmatpush.bf16.msra.mxu0 %v600
          %631 = vmatpush.bf16.msra.mxu0 %v598
          %632 = vmatpush.bf16.msra.mxu0 %v596
          %633 = vmatpush.bf16.msra.mxu0 %v594
          %634 = vmatmul.bf16.gmra.mxu0 %v518
          %v635 = vpop.f32.mrf.mxu0
          %v636 = vadd.f32 %v542, %v635
          %v637 = vpop.f32.mrf.mxu0
          %638 = vdwg.mxu0
          %639 = vmatpush.bf16.msra.mxu0 %v609
          %640 = vmatpush.bf16.msra.mxu0 %v607
          %641 = vmatpush.bf16.msra.mxu0 %v605
          %642 = vmatpush.bf16.msra.mxu0 %v603
          %643 = vmatpush.bf16.msra.mxu0 %v601
          %644 = vmatpush.bf16.msra.mxu0 %v599
          %645 = vmatpush.bf16.msra.mxu0 %v597
          %646 = vmatpush.bf16.msra.mxu0 %v595
          %647 = vmatmul.bf16.gmra.mxu0 %v518
          %v648 = vpop.f32.mrf.mxu0
          %v649 = vadd.f32 %v543, %v648
          %v650 = vpop.f32.mrf.mxu0
          %651 = vdwg.mxu0
          %v652 = vpack.c.bf16 %v636, %v636
          %s653 = smul.addr %s37, 4
          %s654 = scalar_lea.vmem [#allocation2], %s653
          %655 = vst [vmem:[%s654] sm:$0xf] %v652
          %v656 = vpack.c.bf16 %v649, %v649
          %s657 = smul.addr %s37, 4
          %s658 = scalar_lea.vmem [#allocation3], %s657
          %659 = vst [vmem:[%s658] sm:$0xf] %v656
        $region96: #{tpu_custom_call.1} parent=59 // pred_fallthru
          _
        %v660 = vld [vmem:[#allocation5] sm:$0xf]
        %s661 = smul.u32 %s37, 16
        %s662 = smul.addr %s661, 4
        %s663 = scalar_lea.vmem [#allocation11], %s662
        %v664 = vld [vmem:[%s663] sm:$0xf]
        %v665 = vld [vmem:[%s663 + $0x4] sm:$0xf]
        %v666 = vld [vmem:[%s663 + $0x8] sm:$0xf]
        %v667 = vld [vmem:[%s663 + $0xc] sm:$0xf]
        %v668 = vld [vmem:[%s663 + $0x10] sm:$0xf]
        %v669 = vld [vmem:[%s663 + $0x14] sm:$0xf]
        %v670 = vld [vmem:[%s663 + $0x18] sm:$0xf]
        %v671 = vld [vmem:[%s663 + $0x1c] sm:$0xf]
        %v672 = vld [vmem:[%s663 + $0x20] sm:$0xf]
        %v673 = vld [vmem:[%s663 + $0x24] sm:$0xf]
        %v674 = vld [vmem:[%s663 + $0x28] sm:$0xf]
        %v675 = vld [vmem:[%s663 + $0x2c] sm:$0xf]
        %v676 = vld [vmem:[%s663 + $0x30] sm:$0xf]
        %v677 = vld [vmem:[%s663 + $0x34] sm:$0xf]
        %v678 = vld [vmem:[%s663 + $0x38] sm:$0xf]
        %v679 = vld [vmem:[%s663 + $0x3c] sm:$0xf]
        %s680 = scalar_lea.vmem [#allocation12], %s37
        %v681 = vld [vmem:[%s680] sm:$0x1]
        %v683 = vperm.slane %v681, 0
        %v701 = vunpack.c.l.b16 %v664
        %v702 = vunpack.c.l.b16 %v665
        %v703 = vunpack.c.l.b16 %v666
        %v704 = vunpack.c.l.b16 %v667
        %v705 = vunpack.c.l.b16 %v668
        %v706 = vunpack.c.l.b16 %v669
        %v707 = vunpack.c.l.b16 %v670
        %v708 = vunpack.c.l.b16 %v671
        %v709 = vunpack.c.l.b16 %v672
        %v710 = vunpack.c.l.b16 %v673
        %v711 = vunpack.c.l.b16 %v674
        %v712 = vunpack.c.l.b16 %v675
        %v713 = vunpack.c.l.b16 %v676
        %v714 = vunpack.c.l.b16 %v677
        %v715 = vunpack.c.l.b16 %v678
        %v716 = vunpack.c.l.b16 %v679
        %v717 = vpack.c.b16 %v702, %v701
        %v718 = vpack.c.b16 %v704, %v703
        %v719 = vpack.c.b16 %v706, %v705
        %v720 = vpack.c.b16 %v708, %v707
        %v721 = vpack.c.b16 %v710, %v709
        %v722 = vpack.c.b16 %v712, %v711
        %v723 = vpack.c.b16 %v714, %v713
        %v724 = vpack.c.b16 %v716, %v715
        %733 = vmatpush.bf16.msra.mxu0 %v724
        %734 = vmatpush.bf16.msra.mxu0 %v723
        %735 = vmatpush.bf16.msra.mxu0 %v722
        %736 = vmatpush.bf16.msra.mxu0 %v721
        %737 = vmatpush.bf16.msra.mxu0 %v720
        %738 = vmatpush.bf16.msra.mxu0 %v719
        %739 = vmatpush.bf16.msra.mxu0 %v718
        %740 = vmatpush.bf16.msra.mxu0 %v717
        %741 = vmatmul.bf16.gmra.mxu0 %v660
        %v742 = vpop.f32.mrf.mxu0
        %v743 = vadd.f32 %v683, %v742
        %v744 = vpop.f32.mrf.mxu0
        %745 = vdwg.mxu0
        %v746 = vpack.c.bf16 %v743, %v743
        %s747 = smul.addr %s37, 4
        %s748 = scalar_lea.vmem [#allocation2], %s747
        %v749 = vld [vmem:[%s748] sm:$0xf]
        %s750 = smul.addr %s37, 4
        %s751 = scalar_lea.vmem [#allocation3], %s750
        %v752 = vld [vmem:[%s751] sm:$0xf]
        %753 = vmatpush.bf16.xpose.msra.mxu0 0
        %754 = vmatpush.bf16.xpose.msra.mxu0 0
        %755 = vmatpush.bf16.xpose.msra.mxu0 0
        %756 = vmatpush.bf16.xpose.msra.mxu0 0
        %757 = vmatpush.bf16.xpose.msra.mxu0 0
        %758 = vmatpush.bf16.xpose.msra.mxu0 0
        %759 = vmatpush.bf16.xpose.msra.mxu0 0
        %760 = vmatpush.bf16.xpose.msra.mxu0 %v749
        %761 = vmatmul.bf16.gmra.mxu0 %v746
        %v762 = vpop.f32.mrf.mxu0
        %v763 = vadd.f32 0.0, %v762
        %v764 = vpop.f32.mrf.mxu0
        %765 = vdwg.mxu0
        %vm766 = vcmask 64512
        %v767 = vsel %vm766, %v763, -inf
        %768 = vmax.xlane.f32.xlu0 %v767
        %v769 = vpop.xlane.xlu0 %768
        %v770 = vsub.f32 %v763, %v769
        %v771 = vmul.f32 %v770, 1.442695
        %v772 = vpow.pop %v771
        %v773 = vsel %vm766, %v772, 0.0
        %774 = vadd.xlane.f32.xlu0 %v773
        %v775 = vpop.xlane.xlu0 %774
        %v776 = vpack.c.bf16 %v772, %v772
        %v778 = vsel %vm766, %v776, 0
        %vm780 = vcmask 1043456
        %v782 = vsel %vm780, %v752, 0
        %784 = vmatpush.bf16.msra.mxu0 0
        %785 = vmatpush.bf16.msra.mxu0 0
        %786 = vmatpush.bf16.msra.mxu0 0
        %787 = vmatpush.bf16.msra.mxu0 0
        %788 = vmatpush.bf16.msra.mxu0 0
        %789 = vmatpush.bf16.msra.mxu0 0
        %790 = vmatpush.bf16.msra.mxu0 0
        %791 = vmatpush.bf16.msra.mxu0 %v782
        %792 = vmatmul.bf16.gmra.mxu0 %v778
        %v793 = vpop.f32.mrf.mxu0
        %v794 = vadd.f32 0.0, %v793
        %v795 = vpop.f32.mrf.mxu0
        %796 = vdwg.mxu0
        %v797 = vrcp.pop %v775
        %v798 = vmul.f32 %v775, %v797
        %v799 = vsub.f32 1.0, %v798
        %v800 = vmul.f32 %v797, %v799
        %v801 = vadd.f32 %v797, %v800
        %vm802 = vweird.f32 %v775
        %vm803 = vweird.f32 %v797
        %vm804 = vmor %vm802, %vm803
        %v805 = vsel %vm804, %v797, %v801
        %v806 = vand.u32 2147483647, %v775
        %vm807 = vcmp.eq.f32.partialorder %v806, 8.507059e+37
        %v808 = vand.u32 %v775, 2147483648
        %v809 = vor.u32 1.1754944e-38, %v808
        %v810 = vsel %vm807, %v809, %v805
        %v811 = vmul.f32 1.0, %v810
        %v812 = vmul.f32 %v794, %v811
        %v813 = vld [vmem:[#allocation4] sm:$0xff]
        %v814 = vpack.c.bf16 %v812, %v812
        %s815 = smul.addr %s661, 4
        %s816 = scalar_lea.vmem [#allocation17], %s815
        %v817 = vld [vmem:[%s816] sm:$0xf]
        %v818 = vld [vmem:[%s816 + $0x4] sm:$0xf]
        %v819 = vld [vmem:[%s816 + $0x8] sm:$0xf]
        %v820 = vld [vmem:[%s816 + $0xc] sm:$0xf]
        %v821 = vld [vmem:[%s816 + $0x10] sm:$0xf]
        %v822 = vld [vmem:[%s816 + $0x14] sm:$0xf]
        %v823 = vld [vmem:[%s816 + $0x18] sm:$0xf]
        %v824 = vld [vmem:[%s816 + $0x1c] sm:$0xf]
        %v825 = vld [vmem:[%s816 + $0x20] sm:$0xf]
        %v826 = vld [vmem:[%s816 + $0x24] sm:$0xf]
        %v827 = vld [vmem:[%s816 + $0x28] sm:$0xf]
        %v828 = vld [vmem:[%s816 + $0x2c] sm:$0xf]
        %v829 = vld [vmem:[%s816 + $0x30] sm:$0xf]
        %v830 = vld [vmem:[%s816 + $0x34] sm:$0xf]
        %v831 = vld [vmem:[%s816 + $0x38] sm:$0xf]
        %v832 = vld [vmem:[%s816 + $0x3c] sm:$0xf]
        %v849 = vunpack.c.l.b16 %v817
        %v850 = vunpack.c.l.b16 %v818
        %v851 = vunpack.c.l.b16 %v819
        %v852 = vunpack.c.l.b16 %v820
        %v853 = vunpack.c.l.b16 %v821
        %v854 = vunpack.c.l.b16 %v822
        %v855 = vunpack.c.l.b16 %v823
        %v856 = vunpack.c.l.b16 %v824
        %v857 = vunpack.c.l.b16 %v825
        %v858 = vunpack.c.l.b16 %v826
        %v859 = vunpack.c.l.b16 %v827
        %v860 = vunpack.c.l.b16 %v828
        %v861 = vunpack.c.l.b16 %v829
        %v862 = vunpack.c.l.b16 %v830
        %v863 = vunpack.c.l.b16 %v831
        %v864 = vunpack.c.l.b16 %v832
        %v865 = vpack.c.b16 %v850, %v849
        %v866 = vpack.c.b16 %v852, %v851
        %v867 = vpack.c.b16 %v854, %v853
        %v868 = vpack.c.b16 %v856, %v855
        %v869 = vpack.c.b16 %v858, %v857
        %v870 = vpack.c.b16 %v860, %v859
        %v871 = vpack.c.b16 %v862, %v861
        %v872 = vpack.c.b16 %v864, %v863
        %881 = vmatpush.bf16.msra.mxu0 %v872
        %882 = vmatpush.bf16.msra.mxu0 %v871
        %883 = vmatpush.bf16.msra.mxu0 %v870
        %884 = vmatpush.bf16.msra.mxu0 %v869
        %885 = vmatpush.bf16.msra.mxu0 %v868
        %886 = vmatpush.bf16.msra.mxu0 %v867
        %887 = vmatpush.bf16.msra.mxu0 %v866
        %888 = vmatpush.bf16.msra.mxu0 %v865
        %889 = vmatmul.bf16.gmra.mxu0 %v814
        %v890 = vpop.f32.mrf.mxu0
        %v891 = vadd.f32 0.0, %v890
        %v892 = vpop.f32.mrf.mxu0
        %893 = vdwg.mxu0
        %v894 = vadd.f32 %v813, %v891
        %895 = vst [vmem:[#allocation4] sm:$0xff] %v894
        %p896 = scmp.eq.s32.totalorder %s37, 3
        // Predicated region
        $region97: #{tpu_custom_call.1} parent=59 // pred_check
          %p897 = pneg %p896
        $region98: #{tpu_custom_call.1} parent=59 // pred_check_branch
          %899 = sbr.rel (%p897) target = $region100
        $region99: #{tpu_custom_call.1} parent=59 // pred_region
          %v900 = vld [vmem:[#allocation4] sm:$0xff]
          %v901 = vld [vmem:[%s7] sm:$0x1]
          %v903 = vperm.slane %v901, 0
          %v905 = vadd.f32 %v900, %v903
          %v906 = vld [vmem:[%s437] sm:$0xff]
          %v907 = vadd.f32 %v906, %v905
          %908 = vadd.xlane.f32.xlu0 %v907
          %v909 = vpop.xlane.xlu0 %908
          %v910 = vmul.f32 %v909, 0.03125
          %v911 = vsub.f32 %v907, %v910
          %v912 = vmul.f32 %v911, %v911
          %913 = vadd.xlane.f32.xlu0 %v912
          %v914 = vpop.xlane.xlu0 %913
          %v915 = vmul.f32 %v910, 96.0
          %v916 = vmul.f32 %v915, %v910
          %v917 = vsub.f32 %v914, %v916
          %v918 = vmul.f32 %v917, 0.03125
          %v919 = vadd.f32 %v918, 1e-05
          %v920 = vrsqrt.pop %v919
          %v921 = vmul.f32 %v920, %v919
          %v922 = vmul.f32 %v921, %v920
          %v923 = vmul.f32 0.5, %v922
          %v924 = vsub.f32 1.5, %v923
          %v925 = vmul.f32 %v920, %v924
          %vm926 = vweird.f32 %v919
          %vm927 = vweird.f32 %v920
          %vm928 = vmor %vm926, %vm927
          %v929 = vsel %vm928, %v920, %v925
          %v930 = vmul.f32 %v911, %v929
          %v931 = vld [vmem:[%s8] sm:$0x1]
          %v933 = vperm.slane %v931, 0
          %v935 = vmul.f32 %v930, %v933
          %v936 = vld [vmem:[%s9] sm:$0x1]
          %v938 = vperm.slane %v936, 0
          %v940 = vadd.f32 %v935, %v938
          %941 = vst [vmem:[%s504] sm:$0xff] %v940
        $region100: #{tpu_custom_call.1} parent=59 // pred_fallthru
          _
        %s942 = sand.u32 %s281, 1
        %s943 = scalar_lea.sflag [#allocation8], %s942
        %s944 = sand.u32 %s281, 1
        %s945 = smul.addr %s944, 8
        %s946 = scalar_lea.vmem [#allocation18], %s945
        // Predicated region
        $region101: #{tpu_custom_call.1} parent=59 // pred_check
          %p947 = pneg %p291
        $region102: #{tpu_custom_call.1} parent=59 // pred_check_branch
          %949 = sbr.rel (%p947) target = $region104
        $region103: #{tpu_custom_call.1} parent=59 // pred_region
          %951 = vsyncadd %s943, 0
          %s952 = sadd.s32 %s36, %s35
          %s953 = smul.addr %s952, 8
          %s954 = scalar_lea.hbm %s10, %s953
          %s956 = sshll.u32 %s946, 4
          %s957 = int_to_ptr.vmem [resolvable:$true] %s956
          %s958 = sshll.u32 %s954, 4
          %s959 = int_to_ptr.hbm [resolvable:$true] %s958
          %961 = dma.vmem_to_hbm [thread:$0]  %s957, 128, %s959, %s943
        $region104: #{tpu_custom_call.1} parent=59 // pred_fallthru
          _
      $region60: #{tpu_custom_call.1} parent=5 // pred_fallthru
        _
      %p962 = scmp.le.s32.totalorder 2, %s25
      // Predicated region
      $region105: #{tpu_custom_call.1} parent=5 // pred_check
        %p963 = pneg %p962
      $region106: #{tpu_custom_call.1} parent=5 // pred_check_branch
        %965 = sbr.rel (%p963) target = $region108
      $region107: #{tpu_custom_call.1} parent=5 // pred_region
        %s966 = ssub.s32 %s25, 2
        // Predicated region
        $region109: #{tpu_custom_call.1} parent=107 // pred_check
          %p967 = pneg %p297
        $region110: #{tpu_custom_call.1} parent=107 // pred_check_branch
          %969 = sbr.rel (%p967) target = $region112
        $region111: #{tpu_custom_call.1} parent=107 // pred_region
          %s970 = sand.u32 %s282, 1
          %s971 = scalar_lea.sflag [#allocation8], %s970
          %s972 = sand.u32 %s282, 1
          %s973 = smul.addr %s972, 8
          %s974 = scalar_lea.vmem [#allocation18], %s973
          %976 = dma.done %s971, 128
        $region112: #{tpu_custom_call.1} parent=107 // pred_fallthru
          _
      $region108: #{tpu_custom_call.1} parent=5 // pred_fallthru
        _
    $region6: #{tpu_custom_call.1} parent=1 // loop_footer
      %s29 = sadd.s32 1, %s25
    $region7: #{tpu_custom_call.1} parent=1 // loop_footer_branch
      %24 = sbr.rel target = $region3
    $region8: #{tpu_custom_call.1} parent=1 // loop_exit
      _
    %977 = vsyncpa [#allocation7], 1
    %s978 = scalar_lea.sflag [#allocation7], 1
    %979 = vsyncpa %s978, 1
    %980 = vsyncpa [#allocation10], 1
    %981 = vsyncpa [#allocation13], 1
    %982 = vsyncpa [#allocation16], 1
    %983 = vsyncpa [#allocation8], 1
    %s984 = scalar_lea.sflag [#allocation8], 1
    %985 = vsyncpa %s984, 1

// kernel: tpu_custom_call.1
$region0: #{tpu_custom_call.1}
  #allocation0 [shape = 'u32[]', space=smem, size = 0x4, offset = 0x4, fixed_abs, tag = 'smem constant byte address 0x4 - core index']
  #allocation1 [shape = 'u32[72,128]{1,0:T(1,128)}', space=vmem, size = 0x9000, scoped, tag = 'internal scratch']
  #allocation2 [shape = 'bf16[4,8,128]{2,1,0:T(8,128)(2,1)}', space=vmem, size = 0x2000, scoped, tag = 'scratch operand']
  #allocation3 [shape = 'bf16[4,8,128]{2,1,0:T(8,128)(2,1)}', space=vmem, size = 0x2000, scoped, tag = 'scratch operand']
  #allocation4 [shape = 'f32[8,128]{1,0:T(8,128)}', space=vmem, size = 0x1000, scoped, tag = 'scratch operand']
  #allocation5 [shape = 'bf16[8,128]{1,0:T(8,128)(2,1)}', space=vmem, size = 0x800, scoped, tag = 'scratch operand']
  %s0 = inlined_call_operand.hbm [shape: f32[2,8,128], index: 0, kind: input, shape index: {}]
  %s1 = inlined_call_operand.hbm [shape: bf16[2,8,128], index: 1, kind: input, shape index: {}]
  %s2 = inlined_call_operand.hbm [shape: bf16[4,128,128], index: 2, kind: input, shape index: {}]
  %s3 = inlined_call_operand.hbm [shape: f32[4,1,128], index: 3, kind: input, shape index: {}]
  %s4 = inlined_call_operand.hbm [shape: bf16[4,128,256], index: 4, kind: input, shape index: {}]
  %s5 = inlined_call_operand.hbm [shape: f32[4,1,256], index: 5, kind: input, shape index: {}]
  %s6 = inlined_call_operand.hbm [shape: bf16[4,128,128], index: 6, kind: input, shape index: {}]
  %s7 = inlined_call_operand.vmem [shape: f32[1,128], index: 7, kind: input, shape index: {}]
  %s8 = inlined_call_operand.vmem [shape: f32[1,128], index: 8, kind: input, shape index: {}]
  %s9 = inlined_call_operand.vmem [shape: f32[1,128], index: 9, kind: input, shape index: {}]
  %s10 = inlined_call_operand.hbm [shape: f32[2,8,128], index: 10, kind: output, shape index: {}]
  %s11 = sld [smem:[#allocation0]]
  $region113: #{tpu_custom_call.1} parent=0
    _
  %s13 = ssub.s32 1, %s11
  %s14 = scalar_select 0, %s13, %s11
  $region1: #{tpu_custom_call.1} parent=0
    #allocation6 [shape = 'u8[8192]{0}', space=vmem, size = 0x2000, scoped, tag = 'input window, operand 0']
    #allocation7 [shape = 's32[2]{0}', space=sflag, size = 0x8, scoped, tag = 'scoped memory for tpu_custom_call.1']
    #allocation8 [shape = 's32[2]{0}', space=sflag, size = 0x8, scoped, tag = 'scoped memory for tpu_custom_call.1']
    #allocation9 [shape = 'u8[4096]{0}', space=vmem, size = 0x1000, scoped, tag = 'input window, operand 1']
    #allocation10 [shape = 's32[2]{0}', space=sflag, size = 0x8, scoped, tag = 'scoped memory for tpu_custom_call.1']
    #allocation11 [shape = 'u8[131072]{0}', space=vmem, size = 0x20000, scoped, tag = 'input window, operand 2, single buffered']
    #allocation12 [shape = 'u8[2048]{0}', space=vmem, size = 0x800, scoped, tag = 'input window, operand 3, single buffered']
    #allocation13 [shape = 's32[1]{0}', space=sflag, size = 0x4, scoped, tag = 'scoped memory for tpu_custom_call.1']
    #allocation14 [shape = 'u8[262144]{0}', space=vmem, size = 0x40000, scoped, tag = 'input window, operand 4, single buffered']
    #allocation15 [shape = 'u8[4096]{0}', space=vmem, size = 0x1000, scoped, tag = 'input window, operand 5, single buffered']
    #allocation16 [shape = 's32[1]{0}', space=sflag, size = 0x4, scoped, tag = 'scoped memory for tpu_custom_call.1']
    #allocation17 [shape = 'u8[131072]{0}', space=vmem, size = 0x20000, scoped, tag = 'input window, operand 6, single buffered']
    #allocation18 [shape = 'u8[8192]{0}', space=vmem, size = 0x2000, scoped, tag = 'output window, operand 0']
    %15 = vsyncpa [#allocation7], 0
    %s16 = scalar_lea.sflag [#allocation7], 1
    %17 = vsyncpa %s16, 0
    %18 = vsyncpa [#allocation10], 0
    %s19 = scalar_lea.sflag [#allocation10], 1
    %20 = vsyncpa %s19, 0
    %21 = vsyncpa [#allocation13], 0
    %22 = vsyncpa [#allocation16], 0
    %23 = vsyncpa [#allocation8], 0
    %s24 = scalar_lea.sflag [#allocation8], 1
    %25 = vsyncpa %s24, 0
    loop: start=0, step=1, limit=10
    $region2: #{tpu_custom_call.1} parent=1 // loop_pre_header
      _
    $region3: #{tpu_custom_call.1} parent=1 // loop_header
      %s27 = sphi 0, %s31
      %p28 = scmp.ge.s32.totalorder %s27, 10
      %s34 = sphi 0, %s53
      %s35 = sphi 0, %s49
      %s36 = sphi 0, %s45
      %s37 = sphi 0, %s34
      %s38 = sphi 0, %s35
      %s39 = sphi 0, %s36
      %s40 = sphi 0, %s37
      %s41 = sphi 0, %s38
      %s42 = sphi 0, %s39
      %s58 = sphi 0, %s60
      %s61 = sphi 0, %s58
      %s62 = sphi 0, %s61
      %s78 = sphi 0, %s62
      %s84 = sphi 0, %s86
      %s87 = sphi 0, %s84
      %s88 = sphi 0, %s87
      %s104 = sphi 0, %s88
      %s108 = sphi 0, %s108
      %s110 = sphi 0, %s108
      %s111 = sphi 0, %s110
      %s125 = sphi 0, %s111
      %s129 = sphi 0, %s129
      %s131 = sphi 0, %s129
      %s132 = sphi 0, %s131
      %s146 = sphi 0, %s132
      %s150 = sphi 0, %s150
      %s152 = sphi 0, %s150
      %s153 = sphi 0, %s152
      %s167 = sphi 0, %s153
      %s171 = sphi 0, %s171
      %s173 = sphi 0, %s171
      %s174 = sphi 0, %s173
      %s188 = sphi 0, %s174
      %s192 = sphi 0, %s192
      %s194 = sphi 0, %s192
      %s195 = sphi 0, %s194
      %s209 = sphi 0, %s195
      %s213 = sphi 0, %s213
      %s215 = sphi 0, %s213
      %s216 = sphi 0, %s215
      %s230 = sphi 0, %s216
      %s234 = sphi 0, %s234
      %s236 = sphi 0, %s234
      %s237 = sphi 0, %s236
      %s251 = sphi 0, %s237
      %s255 = sphi 0, %s255
      %s257 = sphi 0, %s255
      %s258 = sphi 0, %s257
      %s272 = sphi 0, %s258
      %s280 = sphi 0, %s282
      %s283 = sphi 0, %s280
      %s284 = sphi 0, %s283
      %s300 = sphi 0, %s284
    $region4: #{tpu_custom_call.1} parent=1 // loop_header_branch
      %30 = sbr.rel (%p28) target = $region8
    $region5: #{tpu_custom_call.1} parent=1 // loop_body
      %s32 = ssub.s32 %s27, 1
      %s33 = ssub.s32 %s27, 2
      %s43 = sadd.s32 1, %s36
      %p44 = scmp.ge.s32.totalorder %s43, 4
      %s45 = scalar_select %p44, 0, %s43
      %s46 = sadd.s32 1, %s35
      %s47 = scalar_select %p44, %s46, %s35
      %p48 = scmp.ge.s32.totalorder %s47, 1
      %s49 = scalar_select %p48, 0, %s47
      %s50 = sadd.s32 1, %s34
      %s51 = scalar_select %p48, %s50, %s34
      %p52 = scmp.ge.s32.totalorder %s51, 2
      %s53 = scalar_select %p52, 0, %s51
      %s54 = ssub.s32 %s34, %s53
      %s55 = ssub.s32 %s35, %s49
      %s56 = sor.u32 %s54, %s55
      %p57 = scmp.eq.s32.totalorder %s56, 0
      %s59 = sadd.s32 %s58, 1
      %s60 = scalar_select %p57, %s58, %s59
      %p63 = pneg %p57
      %p64 = scmp.eq.s32.totalorder %s27, 7
      %p65 = por %p63, %p64
      %p66 = scmp.ne.s32.totalorder %s58, %s61
      %p67 = scmp.eq.s32.totalorder %s27, 0
      %p68 = por %p66, %p67
      %p69 = scmp.ne.s32.totalorder %s58, %s61
      %p70 = scmp.eq.s32.totalorder %s32, 7
      %p71 = por %p69, %p70
      %p72 = scmp.ne.s32.totalorder %s61, %s62
      %p73 = scmp.eq.s32.totalorder %s32, 0
      %p74 = por %p72, %p73
      %p75 = scmp.ne.s32.totalorder %s61, %s62
      %p76 = scmp.eq.s32.totalorder %s33, 7
      %p77 = por %p75, %p76
      %p79 = scmp.ne.s32.totalorder %s62, %s78
      %p80 = scmp.eq.s32.totalorder %s33, 0
      %p81 = por %p79, %p80
      %s82 = ssub.s32 %s34, %s53
      %p83 = scmp.eq.s32.totalorder %s82, 0
      %s85 = sadd.s32 %s84, 1
      %s86 = scalar_select %p83, %s84, %s85
      %p89 = pneg %p83
      %p90 = scmp.eq.s32.totalorder %s27, 7
      %p91 = por %p89, %p90
      %p92 = scmp.ne.s32.totalorder %s84, %s87
      %p93 = scmp.eq.s32.totalorder %s27, 0
      %p94 = por %p92, %p93
      %p95 = scmp.ne.s32.totalorder %s84, %s87
      %p96 = scmp.eq.s32.totalorder %s32, 7
      %p97 = por %p95, %p96
      %p98 = scmp.ne.s32.totalorder %s87, %s88
      %p99 = scmp.eq.s32.totalorder %s32, 0
      %p100 = por %p98, %p99
      %p101 = scmp.ne.s32.totalorder %s87, %s88
      %p102 = scmp.eq.s32.totalorder %s33, 7
      %p103 = por %p101, %p102
      %p105 = scmp.ne.s32.totalorder %s88, %s104
      %p106 = scmp.eq.s32.totalorder %s33, 0
      %p107 = por %p105, %p106
      %s109 = sadd.s32 %s108, 1
      %p112 = scmp.eq.s32.totalorder %s27, 7
      %p113 = scmp.ne.s32.totalorder %s108, %s110
      %p114 = scmp.eq.s32.totalorder %s27, 0
      %p115 = por %p113, %p114
      %p116 = scmp.ne.s32.totalorder %s108, %s110
      %p117 = scmp.eq.s32.totalorder %s32, 7
      %p118 = por %p116, %p117
      %p119 = scmp.ne.s32.totalorder %s110, %s111
      %p120 = scmp.eq.s32.totalorder %s32, 0
      %p121 = por %p119, %p120
      %p122 = scmp.ne.s32.totalorder %s110, %s111
      %p123 = scmp.eq.s32.totalorder %s33, 7
      %p124 = por %p122, %p123
      %p126 = scmp.ne.s32.totalorder %s111, %s125
      %p127 = scmp.eq.s32.totalorder %s33, 0
      %p128 = por %p126, %p127
      %s130 = sadd.s32 %s129, 1
      %p133 = scmp.eq.s32.totalorder %s27, 7
      %p134 = scmp.ne.s32.totalorder %s129, %s131
      %p135 = scmp.eq.s32.totalorder %s27, 0
      %p136 = por %p134, %p135
      %p137 = scmp.ne.s32.totalorder %s129, %s131
      %p138 = scmp.eq.s32.totalorder %s32, 7
      %p139 = por %p137, %p138
      %p140 = scmp.ne.s32.totalorder %s131, %s132
      %p141 = scmp.eq.s32.totalorder %s32, 0
      %p142 = por %p140, %p141
      %p143 = scmp.ne.s32.totalorder %s131, %s132
      %p144 = scmp.eq.s32.totalorder %s33, 7
      %p145 = por %p143, %p144
      %p147 = scmp.ne.s32.totalorder %s132, %s146
      %p148 = scmp.eq.s32.totalorder %s33, 0
      %p149 = por %p147, %p148
      %s151 = sadd.s32 %s150, 1
      %p154 = scmp.eq.s32.totalorder %s27, 7
      %p155 = scmp.ne.s32.totalorder %s150, %s152
      %p156 = scmp.eq.s32.totalorder %s27, 0
      %p157 = por %p155, %p156
      %p158 = scmp.ne.s32.totalorder %s150, %s152
      %p159 = scmp.eq.s32.totalorder %s32, 7
      %p160 = por %p158, %p159
      %p161 = scmp.ne.s32.totalorder %s152, %s153
      %p162 = scmp.eq.s32.totalorder %s32, 0
      %p163 = por %p161, %p162
      %p164 = scmp.ne.s32.totalorder %s152, %s153
      %p165 = scmp.eq.s32.totalorder %s33, 7
      %p166 = por %p164, %p165
      %p168 = scmp.ne.s32.totalorder %s153, %s167
      %p169 = scmp.eq.s32.totalorder %s33, 0
      %p170 = por %p168, %p169
      %s172 = sadd.s32 %s171, 1
      %p175 = scmp.eq.s32.totalorder %s27, 7
      %p176 = scmp.ne.s32.totalorder %s171, %s173
      %p177 = scmp.eq.s32.totalorder %s27, 0
      %p178 = por %p176, %p177
      %p179 = scmp.ne.s32.totalorder %s171, %s173
      %p180 = scmp.eq.s32.totalorder %s32, 7
      %p181 = por %p179, %p180
      %p182 = scmp.ne.s32.totalorder %s173, %s174
      %p183 = scmp.eq.s32.totalorder %s32, 0
      %p184 = por %p182, %p183
      %p185 = scmp.ne.s32.totalorder %s173, %s174
      %p186 = scmp.eq.s32.totalorder %s33, 7
      %p187 = por %p185, %p186
      %p189 = scmp.ne.s32.totalorder %s174, %s188
      %p190 = scmp.eq.s32.totalorder %s33, 0
      %p191 = por %p189, %p190
      %s193 = sadd.s32 %s192, 1
      %p196 = scmp.eq.s32.totalorder %s27, 7
      %p197 = scmp.ne.s32.totalorder %s192, %s194
      %p198 = scmp.eq.s32.totalorder %s27, 0
      %p199 = por %p197, %p198
      %p200 = scmp.ne.s32.totalorder %s192, %s194
      %p201 = scmp.eq.s32.totalorder %s32, 7
      %p202 = por %p200, %p201
      %p203 = scmp.ne.s32.totalorder %s194, %s195
      %p204 = scmp.eq.s32.totalorder %s32, 0
      %p205 = por %p203, %p204
      %p206 = scmp.ne.s32.totalorder %s194, %s195
      %p207 = scmp.eq.s32.totalorder %s33, 7
      %p208 = por %p206, %p207
      %p210 = scmp.ne.s32.totalorder %s195, %s209
      %p211 = scmp.eq.s32.totalorder %s33, 0
      %p212 = por %p210, %p211
      %s214 = sadd.s32 %s213, 1
      %p217 = scmp.eq.s32.totalorder %s27, 7
      %p218 = scmp.ne.s32.totalorder %s213, %s215
      %p219 = scmp.eq.s32.totalorder %s27, 0
      %p220 = por %p218, %p219
      %p221 = scmp.ne.s32.totalorder %s213, %s215
      %p222 = scmp.eq.s32.totalorder %s32, 7
      %p223 = por %p221, %p222
      %p224 = scmp.ne.s32.totalorder %s215, %s216
      %p225 = scmp.eq.s32.totalorder %s32, 0
      %p226 = por %p224, %p225
      %p227 = scmp.ne.s32.totalorder %s215, %s216
      %p228 = scmp.eq.s32.totalorder %s33, 7
      %p229 = por %p227, %p228
      %p231 = scmp.ne.s32.totalorder %s216, %s230
      %p232 = scmp.eq.s32.totalorder %s33, 0
      %p233 = por %p231, %p232
      %s235 = sadd.s32 %s234, 1
      %p238 = scmp.eq.s32.totalorder %s27, 7
      %p239 = scmp.ne.s32.totalorder %s234, %s236
      %p240 = scmp.eq.s32.totalorder %s27, 0
      %p241 = por %p239, %p240
      %p242 = scmp.ne.s32.totalorder %s234, %s236
      %p243 = scmp.eq.s32.totalorder %s32, 7
      %p244 = por %p242, %p243
      %p245 = scmp.ne.s32.totalorder %s236, %s237
      %p246 = scmp.eq.s32.totalorder %s32, 0
      %p247 = por %p245, %p246
      %p248 = scmp.ne.s32.totalorder %s236, %s237
      %p249 = scmp.eq.s32.totalorder %s33, 7
      %p250 = por %p248, %p249
      %p252 = scmp.ne.s32.totalorder %s237, %s251
      %p253 = scmp.eq.s32.totalorder %s33, 0
      %p254 = por %p252, %p253
      %s256 = sadd.s32 %s255, 1
      %p259 = scmp.eq.s32.totalorder %s27, 7
      %p260 = scmp.ne.s32.totalorder %s255, %s257
      %p261 = scmp.eq.s32.totalorder %s27, 0
      %p262 = por %p260, %p261
      %p263 = scmp.ne.s32.totalorder %s255, %s257
      %p264 = scmp.eq.s32.totalorder %s32, 7
      %p265 = por %p263, %p264
      %p266 = scmp.ne.s32.totalorder %s257, %s258
      %p267 = scmp.eq.s32.totalorder %s32, 0
      %p268 = por %p266, %p267
      %p269 = scmp.ne.s32.totalorder %s257, %s258
      %p270 = scmp.eq.s32.totalorder %s33, 7
      %p271 = por %p269, %p270
      %p273 = scmp.ne.s32.totalorder %s258, %s272
      %p274 = scmp.eq.s32.totalorder %s33, 0
      %p275 = por %p273, %p274
      %s276 = ssub.s32 %s34, %s53
      %s277 = ssub.s32 %s35, %s49
      %s278 = sor.u32 %s276, %s277
      %p279 = scmp.eq.s32.totalorder %s278, 0
      %s281 = sadd.s32 %s280, 1
      %s282 = scalar_select %p279, %s280, %s281
      %p285 = pneg %p279
      %p286 = scmp.eq.s32.totalorder %s27, 7
      %p287 = por %p285, %p286
      %p288 = scmp.ne.s32.totalorder %s280, %s283
      %p289 = scmp.eq.s32.totalorder %s27, 0
      %p290 = por %p288, %p289
      %p291 = scmp.ne.s32.totalorder %s280, %s283
      %p292 = scmp.eq.s32.totalorder %s32, 7
      %p293 = por %p291, %p292
      %p294 = scmp.ne.s32.totalorder %s283, %s284
      %p295 = scmp.eq.s32.totalorder %s32, 0
      %p296 = por %p294, %p295
      %p297 = scmp.ne.s32.totalorder %s283, %s284
      %p298 = scmp.eq.s32.totalorder %s33, 7
      %p299 = por %p297, %p298
      %p301 = scmp.ne.s32.totalorder %s284, %s300
      %p302 = scmp.eq.s32.totalorder %s33, 0
      %p303 = por %p301, %p302
      %p304 = scmp.le.s32.totalorder 1, %s27
      %p305 = scmp.lt.s32.totalorder %s27, 9
      %p306 = pnand %p304, %p305
      %p307 = pneg %p306
      // Predicated region
      $region9: #{tpu_custom_call.1} parent=5 // pred_check
        _
      $region10: #{tpu_custom_call.1} parent=5 // pred_check_branch
        %309 = sbr.rel (%p306) target = $region12
      $region11: #{tpu_custom_call.1} parent=5 // pred_region
        %s310 = ssub.s32 %s27, 1
        // Predicated region
        $region13: #{tpu_custom_call.1} parent=11 // pred_check
          %p311 = pneg %p121
        $region14: #{tpu_custom_call.1} parent=11 // pred_check_branch
          %313 = sbr.rel (%p311) target = $region16
        $region15: #{tpu_custom_call.1} parent=11 // pred_region
          %315 = vsyncadd [#allocation10], 0
          %s316 = sshll.u32 %s2, 4
          %s317 = int_to_ptr.hbm [resolvable:$true] %s316
          %s318 = sshll.u32 [#allocation11], 4
          %s319 = int_to_ptr.vmem [resolvable:$true] %s318
          %324 = dma.hbm_to_vmem [thread:$0]  %s317, 4096, %s319, [#allocation10], 64, 64, 4
        $region16: #{tpu_custom_call.1} parent=11 // pred_fallthru
          _
        // Predicated region
        $region17: #{tpu_custom_call.1} parent=11 // pred_check
          %p325 = pneg %p142
        $region18: #{tpu_custom_call.1} parent=11 // pred_check_branch
          %327 = sbr.rel (%p325) target = $region20
        $region19: #{tpu_custom_call.1} parent=11 // pred_region
          %329 = vsyncadd [#allocation13], 0
          %s330 = sshll.u32 %s3, 4
          %s331 = int_to_ptr.hbm [resolvable:$true] %s330
          %s332 = sshll.u32 [#allocation12], 4
          %s333 = int_to_ptr.vmem [resolvable:$true] %s332
          %338 = dma.hbm_to_vmem [thread:$0]  %s331, 64, %s333, [#allocation13], 16, 16, 1
        $region20: #{tpu_custom_call.1} parent=11 // pred_fallthru
          _
        // Predicated region
        $region21: #{tpu_custom_call.1} parent=11 // pred_check
          %p339 = pneg %p163
        $region22: #{tpu_custom_call.1} parent=11 // pred_check_branch
          %341 = sbr.rel (%p339) target = $region24
        $region23: #{tpu_custom_call.1} parent=11 // pred_region
          %343 = vsyncadd [#allocation13], 0
          %s344 = sshll.u32 %s4, 4
          %s345 = int_to_ptr.hbm [resolvable:$true] %s344
          %s346 = sshll.u32 [#allocation14], 4
          %s347 = int_to_ptr.vmem [resolvable:$true] %s346
          %352 = dma.hbm_to_vmem [thread:$0]  %s345, 8192, %s347, [#allocation13], 128, 128, 8
        $region24: #{tpu_custom_call.1} parent=11 // pred_fallthru
          _
        // Predicated region
        $region25: #{tpu_custom_call.1} parent=11 // pred_check
          %p353 = pneg %p184
        $region26: #{tpu_custom_call.1} parent=11 // pred_check_branch
          %355 = sbr.rel (%p353) target = $region28
        $region27: #{tpu_custom_call.1} parent=11 // pred_region
          %357 = vsyncadd [#allocation16], 0
          %s358 = sshll.u32 %s5, 4
          %s359 = int_to_ptr.hbm [resolvable:$true] %s358
          %s360 = sshll.u32 [#allocation15], 4
          %s361 = int_to_ptr.vmem [resolvable:$true] %s360
          %366 = dma.hbm_to_vmem [thread:$0]  %s359, 128, %s361, [#allocation16], 32, 32, 2
        $region28: #{tpu_custom_call.1} parent=11 // pred_fallthru
          _
        // Predicated region
        $region29: #{tpu_custom_call.1} parent=11 // pred_check
          %p367 = pneg %p205
        $region30: #{tpu_custom_call.1} parent=11 // pred_check_branch
          %369 = sbr.rel (%p367) target = $region32
        $region31: #{tpu_custom_call.1} parent=11 // pred_region
          %371 = vsyncadd [#allocation16], 0
          %s372 = sshll.u32 %s6, 4
          %s373 = int_to_ptr.hbm [resolvable:$true] %s372
          %s374 = sshll.u32 [#allocation17], 4
          %s375 = int_to_ptr.vmem [resolvable:$true] %s374
          %380 = dma.hbm_to_vmem [thread:$0]  %s373, 4096, %s375, [#allocation16], 64, 64, 4
        $region32: #{tpu_custom_call.1} parent=11 // pred_fallthru
          _
        // Predicated region
        $region33: #{tpu_custom_call.1} parent=11 // pred_check
          %p381 = pneg %p226
        $region34: #{tpu_custom_call.1} parent=11 // pred_check_branch
          %383 = sbr.rel (%p381) target = $region36
        $region35: #{tpu_custom_call.1} parent=11 // pred_region
          _
        $region36: #{tpu_custom_call.1} parent=11 // pred_fallthru
          _
        // Predicated region
        $region37: #{tpu_custom_call.1} parent=11 // pred_check
          %p384 = pneg %p247
        $region38: #{tpu_custom_call.1} parent=11 // pred_check_branch
          %386 = sbr.rel (%p384) target = $region40
        $region39: #{tpu_custom_call.1} parent=11 // pred_region
          _
        $region40: #{tpu_custom_call.1} parent=11 // pred_fallthru
          _
        // Predicated region
        $region41: #{tpu_custom_call.1} parent=11 // pred_check
          %p387 = pneg %p268
        $region42: #{tpu_custom_call.1} parent=11 // pred_check_branch
          %389 = sbr.rel (%p387) target = $region44
        $region43: #{tpu_custom_call.1} parent=11 // pred_region
          _
        $region44: #{tpu_custom_call.1} parent=11 // pred_fallthru
          _
      $region12: #{tpu_custom_call.1} parent=5 // pred_fallthru
        _
      %p390 = scmp.lt.s32.totalorder %s27, 8
      // Predicated region
      $region45: #{tpu_custom_call.1} parent=5 // pred_check
        %p391 = pneg %p390
      $region46: #{tpu_custom_call.1} parent=5 // pred_check_branch
        %393 = sbr.rel (%p391) target = $region48
      $region47: #{tpu_custom_call.1} parent=5 // pred_region
        // Predicated region
        $region49: #{tpu_custom_call.1} parent=47 // pred_check
          %p394 = pneg %p68
        $region50: #{tpu_custom_call.1} parent=47 // pred_check_branch
          %396 = sbr.rel (%p394) target = $region52
        $region51: #{tpu_custom_call.1} parent=47 // pred_region
          %s397 = sand.u32 %s58, 1
          %s398 = scalar_lea.sflag [#allocation7], %s397
          %s399 = sand.u32 %s58, 1
          %s400 = smul.addr %s399, 8
          %s401 = scalar_lea.vmem [#allocation6], %s400
          %403 = vsyncadd %s398, 0
          %s404 = sadd.s32 %s35, %s34
          %s405 = smul.addr %s404, 8
          %s406 = scalar_lea.hbm %s0, %s405
          %s408 = sshll.u32 %s406, 4
          %s409 = int_to_ptr.hbm [resolvable:$true] %s408
          %s410 = sshll.u32 %s401, 4
          %s411 = int_to_ptr.vmem [resolvable:$true] %s410
          %413 = dma.hbm_to_vmem [thread:$0]  %s409, 128, %s411, %s398
        $region52: #{tpu_custom_call.1} parent=47 // pred_fallthru
          _
        // Predicated region
        $region53: #{tpu_custom_call.1} parent=47 // pred_check
          %p414 = pneg %p94
        $region54: #{tpu_custom_call.1} parent=47 // pred_check_branch
          %416 = sbr.rel (%p414) target = $region56
        $region55: #{tpu_custom_call.1} parent=47 // pred_region
          %s417 = sand.u32 %s27, 1
          %s418 = scalar_lea.sflag [#allocation10], %s417
          %s419 = sand.u32 %s84, 1
          %s420 = smul.addr %s419, 4
          %s421 = scalar_lea.vmem [#allocation9], %s420
          %423 = vsyncadd %s418, 0
          %s424 = smul.addr %s34, 4
          %s425 = scalar_lea.hbm %s1, %s424
          %s427 = sshll.u32 %s425, 4
          %s428 = int_to_ptr.hbm [resolvable:$true] %s427
          %s429 = sshll.u32 %s421, 4
          %s430 = int_to_ptr.vmem [resolvable:$true] %s429
          %432 = dma.hbm_to_vmem [thread:$0]  %s428, 64, %s430, %s418
        $region56: #{tpu_custom_call.1} parent=47 // pred_fallthru
          _
      $region48: #{tpu_custom_call.1} parent=5 // pred_fallthru
        _
      %p433 = scmp.le.s32.totalorder 1, %s27
      %p434 = scmp.lt.s32.totalorder %s27, 9
      %p435 = pnand %p433, %p434
      %p436 = pneg %p435
      // Predicated region
      $region57: #{tpu_custom_call.1} parent=5 // pred_check
        _
      $region58: #{tpu_custom_call.1} parent=5 // pred_check_branch
        %438 = sbr.rel (%p435) target = $region60
      $region59: #{tpu_custom_call.1} parent=5 // pred_region
        %s439 = ssub.s32 %s27, 1
        %s440 = sand.u32 %s61, 1
        %s441 = scalar_lea.sflag [#allocation7], %s440
        %s442 = sand.u32 %s61, 1
        %s443 = smul.addr %s442, 8
        %s444 = scalar_lea.vmem [#allocation6], %s443
        // Predicated region
        $region61: #{tpu_custom_call.1} parent=59 // pred_check
          %p445 = pneg %p74
        $region62: #{tpu_custom_call.1} parent=59 // pred_check_branch
          %447 = sbr.rel (%p445) target = $region64
        $region63: #{tpu_custom_call.1} parent=59 // pred_region
          %449 = dma.done %s441, 128
        $region64: #{tpu_custom_call.1} parent=59 // pred_fallthru
          _
        %s450 = sand.u32 %s32, 1
        %s451 = scalar_lea.sflag [#allocation10], %s450
        %s452 = sand.u32 %s87, 1
        %s453 = smul.addr %s452, 4
        %s454 = scalar_lea.vmem [#allocation9], %s453
        // Predicated region
        $region65: #{tpu_custom_call.1} parent=59 // pred_check
          %p455 = pneg %p100
        $region66: #{tpu_custom_call.1} parent=59 // pred_check_branch
          %457 = sbr.rel (%p455) target = $region68
        $region67: #{tpu_custom_call.1} parent=59 // pred_region
          %459 = dma.done %s451, 64
        $region68: #{tpu_custom_call.1} parent=59 // pred_fallthru
          _
        // Predicated region
        $region69: #{tpu_custom_call.1} parent=59 // pred_check
          %p460 = pneg %p121
        $region70: #{tpu_custom_call.1} parent=59 // pred_check_branch
          %462 = sbr.rel (%p460) target = $region72
        $region71: #{tpu_custom_call.1} parent=59 // pred_region
          %464 = dma.done [#allocation10], 4096
        $region72: #{tpu_custom_call.1} parent=59 // pred_fallthru
          _
        // Predicated region
        $region73: #{tpu_custom_call.1} parent=59 // pred_check
          %p465 = pneg %p142
        $region74: #{tpu_custom_call.1} parent=59 // pred_check_branch
          %467 = sbr.rel (%p465) target = $region76
        $region75: #{tpu_custom_call.1} parent=59 // pred_region
          %469 = dma.done [#allocation13], 64
        $region76: #{tpu_custom_call.1} parent=59 // pred_fallthru
          _
        // Predicated region
        $region77: #{tpu_custom_call.1} parent=59 // pred_check
          %p470 = pneg %p163
        $region78: #{tpu_custom_call.1} parent=59 // pred_check_branch
          %472 = sbr.rel (%p470) target = $region80
        $region79: #{tpu_custom_call.1} parent=59 // pred_region
          %474 = dma.done [#allocation13], 8192
        $region80: #{tpu_custom_call.1} parent=59 // pred_fallthru
          _
        // Predicated region
        $region81: #{tpu_custom_call.1} parent=59 // pred_check
          %p475 = pneg %p184
        $region82: #{tpu_custom_call.1} parent=59 // pred_check_branch
          %477 = sbr.rel (%p475) target = $region84
        $region83: #{tpu_custom_call.1} parent=59 // pred_region
          %479 = dma.done [#allocation16], 128
        $region84: #{tpu_custom_call.1} parent=59 // pred_fallthru
          _
        // Predicated region
        $region85: #{tpu_custom_call.1} parent=59 // pred_check
          %p480 = pneg %p205
        $region86: #{tpu_custom_call.1} parent=59 // pred_check_branch
          %482 = sbr.rel (%p480) target = $region88
        $region87: #{tpu_custom_call.1} parent=59 // pred_region
          %484 = dma.done [#allocation16], 4096
        $region88: #{tpu_custom_call.1} parent=59 // pred_fallthru
          _
        %s485 = sand.u32 %s61, 1
        %s486 = scalar_lea.sflag [#allocation7], %s485
        %s487 = sand.u32 %s61, 1
        %s488 = smul.addr %s487, 8
        %s489 = scalar_lea.vmem [#allocation6], %s488
        %p490 = pneg %p74
        %p491 = pneg %p71
        %s492 = sand.u32 %s32, 1
        %s493 = scalar_lea.sflag [#allocation10], %s492
        %s494 = sand.u32 %s87, 1
        %s495 = smul.addr %s494, 4
        %s496 = scalar_lea.vmem [#allocation9], %s495
        %p497 = pneg %p100
        %p498 = pneg %p97
        %p499 = pneg %p121
        %p500 = pneg %p118
        %p501 = pneg %p142
        %p502 = pneg %p139
        %p503 = pneg %p163
        %p504 = pneg %p160
        %p505 = pneg %p184
        %p506 = pneg %p181
        %p507 = pneg %p205
        %p508 = pneg %p202
        %p509 = pneg %p226
        %p510 = pneg %p223
        %p511 = pneg %p247
        %p512 = pneg %p244
        %p513 = pneg %p268
        %p514 = pneg %p265
        %p515 = pneg %p296
        %p516 = pneg %p293
        %s517 = sand.u32 %s283, 1
        %s518 = scalar_lea.sflag [#allocation8], %s517
        %s519 = sand.u32 %s283, 1
        %s520 = smul.addr %s519, 8
        %s521 = scalar_lea.vmem [#allocation18], %s520
        %p523 = scmp.eq.s32.totalorder %s39, 0
        // Predicated region
        $region89: #{tpu_custom_call.1} parent=59 // pred_check
          %p524 = pneg %p523
        $region90: #{tpu_custom_call.1} parent=59 // pred_check_branch
          %526 = sbr.rel (%p524) target = $region92
        $region91: #{tpu_custom_call.1} parent=59 // pred_region
          %v527 = vld [vmem:[%s444] sm:$0xff]
          %v528 = vpack.c.bf16 %v527, %v527
          %529 = vst [vmem:[#allocation5] sm:$0xf] %v528
          %530 = vst [vmem:[#allocation4] sm:$0xff] 0.0
        $region92: #{tpu_custom_call.1} parent=59 // pred_fallthru
          _
        %p531 = scmp.eq.s32.totalorder %s38, 0
        // Predicated region
        $region93: #{tpu_custom_call.1} parent=59 // pred_check
          %p532 = pneg %p531
        $region94: #{tpu_custom_call.1} parent=59 // pred_check_branch
          %534 = sbr.rel (%p532) target = $region96
        $region95: #{tpu_custom_call.1} parent=59 // pred_region
          %v535 = vld [vmem:[%s454] sm:$0xf]
          %s536 = smul.u32 %s39, 32
          %s537 = smul.addr %s536, 4
          %s538 = scalar_lea.vmem [#allocation14], %s537
          %v539 = vld [vmem:[%s538] sm:$0xff]
          %v540 = vld [vmem:[%s538 + $0x8] sm:$0xff]
          %v541 = vld [vmem:[%s538 + $0x10] sm:$0xff]
          %v542 = vld [vmem:[%s538 + $0x18] sm:$0xff]
          %v543 = vld [vmem:[%s538 + $0x20] sm:$0xff]
          %v544 = vld [vmem:[%s538 + $0x28] sm:$0xff]
          %v545 = vld [vmem:[%s538 + $0x30] sm:$0xff]
          %v546 = vld [vmem:[%s538 + $0x38] sm:$0xff]
          %v547 = vld [vmem:[%s538 + $0x40] sm:$0xff]
          %v548 = vld [vmem:[%s538 + $0x48] sm:$0xff]
          %v549 = vld [vmem:[%s538 + $0x50] sm:$0xff]
          %v550 = vld [vmem:[%s538 + $0x58] sm:$0xff]
          %v551 = vld [vmem:[%s538 + $0x60] sm:$0xff]
          %v552 = vld [vmem:[%s538 + $0x68] sm:$0xff]
          %v553 = vld [vmem:[%s538 + $0x70] sm:$0xff]
          %v554 = vld [vmem:[%s538 + $0x78] sm:$0xff]
          %s555 = smul.u32 %s39, 2
          %s556 = scalar_lea.vmem [#allocation15], %s555
          %v557 = vld [vmem:[%s556] sm:$0x3]
          %v559 = vperm.slane %v557, 0
          %v560 = vperm.slane %v557, 1
          %v579 = vunpack.c.l.b16 %v539
          %v580 = vunpack.c.h.b16 %v539
          %v581 = vunpack.c.l.b16 %v540
          %v582 = vunpack.c.h.b16 %v540
          %v583 = vunpack.c.l.b16 %v541
          %v584 = vunpack.c.h.b16 %v541
          %v585 = vunpack.c.l.b16 %v542
          %v586 = vunpack.c.h.b16 %v542
          %v587 = vunpack.c.l.b16 %v543
          %v588 = vunpack.c.h.b16 %v543
          %v589 = vunpack.c.l.b16 %v544
          %v590 = vunpack.c.h.b16 %v544
          %v591 = vunpack.c.l.b16 %v545
          %v592 = vunpack.c.h.b16 %v545
          %v593 = vunpack.c.l.b16 %v546
          %v594 = vunpack.c.h.b16 %v546
          %v595 = vunpack.c.l.b16 %v547
          %v596 = vunpack.c.h.b16 %v547
          %v597 = vunpack.c.l.b16 %v548
          %v598 = vunpack.c.h.b16 %v548
          %v599 = vunpack.c.l.b16 %v549
          %v600 = vunpack.c.h.b16 %v549
          %v601 = vunpack.c.l.b16 %v550
          %v602 = vunpack.c.h.b16 %v550
          %v603 = vunpack.c.l.b16 %v551
          %v604 = vunpack.c.h.b16 %v551
          %v605 = vunpack.c.l.b16 %v552
          %v606 = vunpack.c.h.b16 %v552
          %v607 = vunpack.c.l.b16 %v553
          %v608 = vunpack.c.h.b16 %v553
          %v609 = vunpack.c.l.b16 %v554
          %v610 = vunpack.c.h.b16 %v554
          %v611 = vpack.c.b16 %v581, %v579
          %v612 = vpack.c.b16 %v582, %v580
          %v613 = vpack.c.b16 %v585, %v583
          %v614 = vpack.c.b16 %v586, %v584
          %v615 = vpack.c.b16 %v589, %v587
          %v616 = vpack.c.b16 %v590, %v588
          %v617 = vpack.c.b16 %v593, %v591
          %v618 = vpack.c.b16 %v594, %v592
          %v619 = vpack.c.b16 %v597, %v595
          %v620 = vpack.c.b16 %v598, %v596
          %v621 = vpack.c.b16 %v601, %v599
          %v622 = vpack.c.b16 %v602, %v600
          %v623 = vpack.c.b16 %v605, %v603
          %v624 = vpack.c.b16 %v606, %v604
          %v625 = vpack.c.b16 %v609, %v607
          %v626 = vpack.c.b16 %v610, %v608
          %643 = vmatpush.bf16.msra.mxu0 %v625
          %644 = vmatpush.bf16.msra.mxu0 %v623
          %645 = vmatpush.bf16.msra.mxu0 %v621
          %646 = vmatpush.bf16.msra.mxu0 %v619
          %647 = vmatpush.bf16.msra.mxu0 %v617
          %648 = vmatpush.bf16.msra.mxu0 %v615
          %649 = vmatpush.bf16.msra.mxu0 %v613
          %650 = vmatpush.bf16.msra.mxu0 %v611
          %651 = vmatmul.bf16.gmra.mxu0 %v535
          %v652 = vpop.f32.mrf.mxu0
          %v653 = vadd.f32 %v559, %v652
          %v654 = vpop.f32.mrf.mxu0
          %655 = vdwg.mxu0
          %656 = vmatpush.bf16.msra.mxu0 %v626
          %657 = vmatpush.bf16.msra.mxu0 %v624
          %658 = vmatpush.bf16.msra.mxu0 %v622
          %659 = vmatpush.bf16.msra.mxu0 %v620
          %660 = vmatpush.bf16.msra.mxu0 %v618
          %661 = vmatpush.bf16.msra.mxu0 %v616
          %662 = vmatpush.bf16.msra.mxu0 %v614
          %663 = vmatpush.bf16.msra.mxu0 %v612
          %664 = vmatmul.bf16.gmra.mxu0 %v535
          %v665 = vpop.f32.mrf.mxu0
          %v666 = vadd.f32 %v560, %v665
          %v667 = vpop.f32.mrf.mxu0
          %668 = vdwg.mxu0
          %v669 = vpack.c.bf16 %v653, %v653
          %s670 = smul.addr %s39, 4
          %s671 = scalar_lea.vmem [#allocation2], %s670
          %672 = vst [vmem:[%s671] sm:$0xf] %v669
          %v673 = vpack.c.bf16 %v666, %v666
          %s674 = smul.addr %s39, 4
          %s675 = scalar_lea.vmem [#allocation3], %s674
          %676 = vst [vmem:[%s675] sm:$0xf] %v673
        $region96: #{tpu_custom_call.1} parent=59 // pred_fallthru
          _
        %v677 = vld [vmem:[#allocation5] sm:$0xf]
        %s678 = smul.u32 %s39, 16
        %s679 = smul.addr %s678, 4
        %s680 = scalar_lea.vmem [#allocation11], %s679
        %v681 = vld [vmem:[%s680] sm:$0xf]
        %v682 = vld [vmem:[%s680 + $0x4] sm:$0xf]
        %v683 = vld [vmem:[%s680 + $0x8] sm:$0xf]
        %v684 = vld [vmem:[%s680 + $0xc] sm:$0xf]
        %v685 = vld [vmem:[%s680 + $0x10] sm:$0xf]
        %v686 = vld [vmem:[%s680 + $0x14] sm:$0xf]
        %v687 = vld [vmem:[%s680 + $0x18] sm:$0xf]
        %v688 = vld [vmem:[%s680 + $0x1c] sm:$0xf]
        %v689 = vld [vmem:[%s680 + $0x20] sm:$0xf]
        %v690 = vld [vmem:[%s680 + $0x24] sm:$0xf]
        %v691 = vld [vmem:[%s680 + $0x28] sm:$0xf]
        %v692 = vld [vmem:[%s680 + $0x2c] sm:$0xf]
        %v693 = vld [vmem:[%s680 + $0x30] sm:$0xf]
        %v694 = vld [vmem:[%s680 + $0x34] sm:$0xf]
        %v695 = vld [vmem:[%s680 + $0x38] sm:$0xf]
        %v696 = vld [vmem:[%s680 + $0x3c] sm:$0xf]
        %s697 = scalar_lea.vmem [#allocation12], %s39
        %v698 = vld [vmem:[%s697] sm:$0x1]
        %v700 = vperm.slane %v698, 0
        %v718 = vunpack.c.l.b16 %v681
        %v719 = vunpack.c.l.b16 %v682
        %v720 = vunpack.c.l.b16 %v683
        %v721 = vunpack.c.l.b16 %v684
        %v722 = vunpack.c.l.b16 %v685
        %v723 = vunpack.c.l.b16 %v686
        %v724 = vunpack.c.l.b16 %v687
        %v725 = vunpack.c.l.b16 %v688
        %v726 = vunpack.c.l.b16 %v689
        %v727 = vunpack.c.l.b16 %v690
        %v728 = vunpack.c.l.b16 %v691
        %v729 = vunpack.c.l.b16 %v692
        %v730 = vunpack.c.l.b16 %v693
        %v731 = vunpack.c.l.b16 %v694
        %v732 = vunpack.c.l.b16 %v695
        %v733 = vunpack.c.l.b16 %v696
        %v734 = vpack.c.b16 %v719, %v718
        %v735 = vpack.c.b16 %v721, %v720
        %v736 = vpack.c.b16 %v723, %v722
        %v737 = vpack.c.b16 %v725, %v724
        %v738 = vpack.c.b16 %v727, %v726
        %v739 = vpack.c.b16 %v729, %v728
        %v740 = vpack.c.b16 %v731, %v730
        %v741 = vpack.c.b16 %v733, %v732
        %750 = vmatpush.bf16.msra.mxu0 %v741
        %751 = vmatpush.bf16.msra.mxu0 %v740
        %752 = vmatpush.bf16.msra.mxu0 %v739
        %753 = vmatpush.bf16.msra.mxu0 %v738
        %754 = vmatpush.bf16.msra.mxu0 %v737
        %755 = vmatpush.bf16.msra.mxu0 %v736
        %756 = vmatpush.bf16.msra.mxu0 %v735
        %757 = vmatpush.bf16.msra.mxu0 %v734
        %758 = vmatmul.bf16.gmra.mxu0 %v677
        %v759 = vpop.f32.mrf.mxu0
        %v760 = vadd.f32 %v700, %v759
        %v761 = vpop.f32.mrf.mxu0
        %762 = vdwg.mxu0
        %v763 = vpack.c.bf16 %v760, %v760
        %s764 = smul.addr %s39, 4
        %s765 = scalar_lea.vmem [#allocation2], %s764
        %v766 = vld [vmem:[%s765] sm:$0xf]
        %s767 = smul.addr %s39, 4
        %s768 = scalar_lea.vmem [#allocation3], %s767
        %v769 = vld [vmem:[%s768] sm:$0xf]
        %770 = vmatpush.bf16.xpose.msra.mxu0 0
        %771 = vmatpush.bf16.xpose.msra.mxu0 0
        %772 = vmatpush.bf16.xpose.msra.mxu0 0
        %773 = vmatpush.bf16.xpose.msra.mxu0 0
        %774 = vmatpush.bf16.xpose.msra.mxu0 0
        %775 = vmatpush.bf16.xpose.msra.mxu0 0
        %776 = vmatpush.bf16.xpose.msra.mxu0 0
        %777 = vmatpush.bf16.xpose.msra.mxu0 %v766
        %778 = vmatmul.bf16.gmra.mxu0 %v763
        %v779 = vpop.f32.mrf.mxu0
        %v780 = vadd.f32 0.0, %v779
        %v781 = vpop.f32.mrf.mxu0
        %782 = vdwg.mxu0
        %vm783 = vcmask 64512
        %v784 = vsel %vm783, %v780, -inf
        %785 = vmax.xlane.f32.xlu0 %v784
        %v786 = vpop.xlane.xlu0 %785
        %v787 = vsub.f32 %v780, %v786
        %v788 = vmul.f32 %v787, 1.442695
        %v789 = vpow.pop %v788
        %v790 = vsel %vm783, %v789, 0.0
        %791 = vadd.xlane.f32.xlu0 %v790
        %v792 = vpop.xlane.xlu0 %791
        %v793 = vpack.c.bf16 %v789, %v789
        %v795 = vsel %vm783, %v793, 0
        %vm797 = vcmask 1043456
        %v799 = vsel %vm797, %v769, 0
        %801 = vmatpush.bf16.msra.mxu0 0
        %802 = vmatpush.bf16.msra.mxu0 0
        %803 = vmatpush.bf16.msra.mxu0 0
        %804 = vmatpush.bf16.msra.mxu0 0
        %805 = vmatpush.bf16.msra.mxu0 0
        %806 = vmatpush.bf16.msra.mxu0 0
        %807 = vmatpush.bf16.msra.mxu0 0
        %808 = vmatpush.bf16.msra.mxu0 %v799
        %809 = vmatmul.bf16.gmra.mxu0 %v795
        %v810 = vpop.f32.mrf.mxu0
        %v811 = vadd.f32 0.0, %v810
        %v812 = vpop.f32.mrf.mxu0
        %813 = vdwg.mxu0
        %v814 = vrcp.pop %v792
        %v815 = vmul.f32 %v792, %v814
        %v816 = vsub.f32 1.0, %v815
        %v817 = vmul.f32 %v814, %v816
        %v818 = vadd.f32 %v814, %v817
        %vm819 = vweird.f32 %v792
        %vm820 = vweird.f32 %v814
        %vm821 = vmor %vm819, %vm820
        %v822 = vsel %vm821, %v814, %v818
        %v823 = vand.u32 2147483647, %v792
        %vm824 = vcmp.eq.f32.partialorder %v823, 8.507059e+37
        %v825 = vand.u32 %v792, 2147483648
        %v826 = vor.u32 1.1754944e-38, %v825
        %v827 = vsel %vm824, %v826, %v822
        %v828 = vmul.f32 1.0, %v827
        %v829 = vmul.f32 %v811, %v828
        %v830 = vld [vmem:[#allocation4] sm:$0xff]
        %v831 = vpack.c.bf16 %v829, %v829
        %s832 = smul.addr %s678, 4
        %s833 = scalar_lea.vmem [#allocation17], %s832
        %v834 = vld [vmem:[%s833] sm:$0xf]
        %v835 = vld [vmem:[%s833 + $0x4] sm:$0xf]
        %v836 = vld [vmem:[%s833 + $0x8] sm:$0xf]
        %v837 = vld [vmem:[%s833 + $0xc] sm:$0xf]
        %v838 = vld [vmem:[%s833 + $0x10] sm:$0xf]
        %v839 = vld [vmem:[%s833 + $0x14] sm:$0xf]
        %v840 = vld [vmem:[%s833 + $0x18] sm:$0xf]
        %v841 = vld [vmem:[%s833 + $0x1c] sm:$0xf]
        %v842 = vld [vmem:[%s833 + $0x20] sm:$0xf]
        %v843 = vld [vmem:[%s833 + $0x24] sm:$0xf]
        %v844 = vld [vmem:[%s833 + $0x28] sm:$0xf]
        %v845 = vld [vmem:[%s833 + $0x2c] sm:$0xf]
        %v846 = vld [vmem:[%s833 + $0x30] sm:$0xf]
        %v847 = vld [vmem:[%s833 + $0x34] sm:$0xf]
        %v848 = vld [vmem:[%s833 + $0x38] sm:$0xf]
        %v849 = vld [vmem:[%s833 + $0x3c] sm:$0xf]
        %v866 = vunpack.c.l.b16 %v834
        %v867 = vunpack.c.l.b16 %v835
        %v868 = vunpack.c.l.b16 %v836
        %v869 = vunpack.c.l.b16 %v837
        %v870 = vunpack.c.l.b16 %v838
        %v871 = vunpack.c.l.b16 %v839
        %v872 = vunpack.c.l.b16 %v840
        %v873 = vunpack.c.l.b16 %v841
        %v874 = vunpack.c.l.b16 %v842
        %v875 = vunpack.c.l.b16 %v843
        %v876 = vunpack.c.l.b16 %v844
        %v877 = vunpack.c.l.b16 %v845
        %v878 = vunpack.c.l.b16 %v846
        %v879 = vunpack.c.l.b16 %v847
        %v880 = vunpack.c.l.b16 %v848
        %v881 = vunpack.c.l.b16 %v849
        %v882 = vpack.c.b16 %v867, %v866
        %v883 = vpack.c.b16 %v869, %v868
        %v884 = vpack.c.b16 %v871, %v870
        %v885 = vpack.c.b16 %v873, %v872
        %v886 = vpack.c.b16 %v875, %v874
        %v887 = vpack.c.b16 %v877, %v876
        %v888 = vpack.c.b16 %v879, %v878
        %v889 = vpack.c.b16 %v881, %v880
        %898 = vmatpush.bf16.msra.mxu0 %v889
        %899 = vmatpush.bf16.msra.mxu0 %v888
        %900 = vmatpush.bf16.msra.mxu0 %v887
        %901 = vmatpush.bf16.msra.mxu0 %v886
        %902 = vmatpush.bf16.msra.mxu0 %v885
        %903 = vmatpush.bf16.msra.mxu0 %v884
        %904 = vmatpush.bf16.msra.mxu0 %v883
        %905 = vmatpush.bf16.msra.mxu0 %v882
        %906 = vmatmul.bf16.gmra.mxu0 %v831
        %v907 = vpop.f32.mrf.mxu0
        %v908 = vadd.f32 0.0, %v907
        %v909 = vpop.f32.mrf.mxu0
        %910 = vdwg.mxu0
        %v911 = vadd.f32 %v830, %v908
        %912 = vst [vmem:[#allocation4] sm:$0xff] %v911
        %p913 = scmp.eq.s32.totalorder %s39, 3
        // Predicated region
        $region97: #{tpu_custom_call.1} parent=59 // pred_check
          %p914 = pneg %p913
        $region98: #{tpu_custom_call.1} parent=59 // pred_check_branch
          %916 = sbr.rel (%p914) target = $region100
        $region99: #{tpu_custom_call.1} parent=59 // pred_region
          %v917 = vld [vmem:[#allocation4] sm:$0xff]
          %v918 = vld [vmem:[%s7] sm:$0x1]
          %v920 = vperm.slane %v918, 0
          %v922 = vadd.f32 %v917, %v920
          %v923 = vld [vmem:[%s444] sm:$0xff]
          %v924 = vadd.f32 %v923, %v922
          %925 = vadd.xlane.f32.xlu0 %v924
          %v926 = vpop.xlane.xlu0 %925
          %v927 = vmul.f32 %v926, 0.03125
          %v928 = vsub.f32 %v924, %v927
          %v929 = vmul.f32 %v928, %v928
          %930 = vadd.xlane.f32.xlu0 %v929
          %v931 = vpop.xlane.xlu0 %930
          %v932 = vmul.f32 %v927, 96.0
          %v933 = vmul.f32 %v932, %v927
          %v934 = vsub.f32 %v931, %v933
          %v935 = vmul.f32 %v934, 0.03125
          %v936 = vadd.f32 %v935, 1e-05
          %v937 = vrsqrt.pop %v936
          %v938 = vmul.f32 %v937, %v936
          %v939 = vmul.f32 %v938, %v937
          %v940 = vmul.f32 0.5, %v939
          %v941 = vsub.f32 1.5, %v940
          %v942 = vmul.f32 %v937, %v941
          %vm943 = vweird.f32 %v936
          %vm944 = vweird.f32 %v937
          %vm945 = vmor %vm943, %vm944
          %v946 = vsel %vm945, %v937, %v942
          %v947 = vmul.f32 %v928, %v946
          %v948 = vld [vmem:[%s8] sm:$0x1]
          %v950 = vperm.slane %v948, 0
          %v952 = vmul.f32 %v947, %v950
          %v953 = vld [vmem:[%s9] sm:$0x1]
          %v955 = vperm.slane %v953, 0
          %v957 = vadd.f32 %v952, %v955
          %958 = vst [vmem:[%s521] sm:$0xff] %v957
        $region100: #{tpu_custom_call.1} parent=59 // pred_fallthru
          _
        %s959 = sand.u32 %s283, 1
        %s960 = scalar_lea.sflag [#allocation8], %s959
        %s961 = sand.u32 %s283, 1
        %s962 = smul.addr %s961, 8
        %s963 = scalar_lea.vmem [#allocation18], %s962
        // Predicated region
        $region101: #{tpu_custom_call.1} parent=59 // pred_check
          %p964 = pneg %p293
        $region102: #{tpu_custom_call.1} parent=59 // pred_check_branch
          %966 = sbr.rel (%p964) target = $region104
        $region103: #{tpu_custom_call.1} parent=59 // pred_region
          %968 = vsyncadd %s960, 0
          %s969 = sadd.s32 %s38, %s37
          %s970 = smul.addr %s969, 8
          %s971 = scalar_lea.hbm %s10, %s970
          %s973 = sshll.u32 %s963, 4
          %s974 = int_to_ptr.vmem [resolvable:$true] %s973
          %s975 = sshll.u32 %s971, 4
          %s976 = int_to_ptr.hbm [resolvable:$true] %s975
          %978 = dma.vmem_to_hbm [thread:$0]  %s974, 128, %s976, %s960
        $region104: #{tpu_custom_call.1} parent=59 // pred_fallthru
          _
      $region60: #{tpu_custom_call.1} parent=5 // pred_fallthru
        _
      %p979 = scmp.le.s32.totalorder 2, %s27
      // Predicated region
      $region105: #{tpu_custom_call.1} parent=5 // pred_check
        %p980 = pneg %p979
      $region106: #{tpu_custom_call.1} parent=5 // pred_check_branch
        %982 = sbr.rel (%p980) target = $region108
      $region107: #{tpu_custom_call.1} parent=5 // pred_region
        %s983 = ssub.s32 %s27, 2
        // Predicated region
        $region109: #{tpu_custom_call.1} parent=107 // pred_check
          %p984 = pneg %p299
        $region110: #{tpu_custom_call.1} parent=107 // pred_check_branch
          %986 = sbr.rel (%p984) target = $region112
        $region111: #{tpu_custom_call.1} parent=107 // pred_region
          %s987 = sand.u32 %s284, 1
          %s988 = scalar_lea.sflag [#allocation8], %s987
          %s989 = sand.u32 %s284, 1
          %s990 = smul.addr %s989, 8
          %s991 = scalar_lea.vmem [#allocation18], %s990
          %993 = dma.done %s988, 128
        $region112: #{tpu_custom_call.1} parent=107 // pred_fallthru
          _
      $region108: #{tpu_custom_call.1} parent=5 // pred_fallthru
        _
    $region6: #{tpu_custom_call.1} parent=1 // loop_footer
      %s31 = sadd.s32 1, %s27
    $region7: #{tpu_custom_call.1} parent=1 // loop_footer_branch
      %26 = sbr.rel target = $region3
    $region8: #{tpu_custom_call.1} parent=1 // loop_exit
      _
    %994 = vsyncpa [#allocation7], 1
    %s995 = scalar_lea.sflag [#allocation7], 1
    %996 = vsyncpa %s995, 1
    %997 = vsyncpa [#allocation10], 1
    %s998 = scalar_lea.sflag [#allocation10], 1
    %999 = vsyncpa %s998, 1
    %1000 = vsyncpa [#allocation13], 1
    %1001 = vsyncpa [#allocation16], 1
    %1002 = vsyncpa [#allocation8], 1
    %s1003 = scalar_lea.sflag [#allocation8], 1
    %1004 = vsyncpa %s1003, 1

</llo_original>
